<compile_context>
chip_gen: v7x
topology: tpu7x:2x2x1
jax: 0.10.0
libtpu: 0.0.40
codegen_flags: <defaults>
</compile_context>

<pallas_src>
import functools

import jax
import jax.numpy as jnp
from jax import lax
from jax.experimental import pallas as pl
from jax.experimental.pallas import tpu as pltpu

EPS = 1e-5


# --------------------------- shared conv tile --------------------------------
def _conv_tile(x_ref, w_ref, mask_ref, taps_ref, *, img_w):
    """Build the 9 im2col taps for one image in VMEM and run ONE MXU matmul.

    x_ref   : (1, Cin, H*W + 2*(W+1)) bf16  flattened plane, W+1 zeros each side
    w_ref   : (Cout, 9*Cin)           bf16  tap-major (dy,dx), cin inner
    mask_ref: (2, H*W)                bf16  [0]=left-col valid, [1]=right-col valid
    taps_ref: (9*Cin, H*W)            bf16  VMEM scratch
    returns : (Cout, H*W) f32 bias-free conv output.
    """
    cin = x_ref.shape[1]
    hw = mask_ref.shape[1]
    x = x_ref[0]                       # (Cin, HW + 2W + 2), loaded once
    mask_l = mask_ref[0:1, :]
    mask_r = mask_ref[1:2, :]
    base = img_w + 1
    k = 0
    for dy in (-1, 0, 1):
        for dx in (-1, 0, 1):
            start = base + dy * img_w + dx            # static lane offset
            t = x[:, start:start + hw]                # (Cin, HW)
            if dx == -1:
                t = t * mask_l                        # zero the w==0 column
            elif dx == 1:
                t = t * mask_r                        # zero the w==W-1 column
            taps_ref[k * cin:(k + 1) * cin, :] = t    # row boundaries are real zeros
            k += 1
    # single MXU contraction over K = 9*Cin, f32 accumulation
    return jnp.dot(w_ref[...], taps_ref[...], preferred_element_type=jnp.float32)


# ------------------- pass 1: conv + per-image BN partials --------------------
def _stats_kernel(x_ref, w_ref, mask_ref, sum_ref, sq_ref, taps_ref, *, img_w):
    y = _conv_tile(x_ref, w_ref, mask_ref, taps_ref, img_w=img_w)   # (Cout, HW) f32
    sum_ref[0] = jnp.sum(y, axis=1, keepdims=True)                  # (Cout, 1)
    sq_ref[0] = jnp.sum(y * y, axis=1, keepdims=True)


# -------------- pass 2: recompute conv fused with BN affine + ReLU -----------
def _conv_bn_relu_kernel(x_ref, w_ref, mask_ref, scale_ref, shift_ref, out_ref,
                         taps_ref, *, img_w):
    y = _conv_tile(x_ref, w_ref, mask_ref, taps_ref, img_w=img_w)   # (Cout, HW) f32
    out_ref[0] = jnp.maximum(y * scale_ref[...] + shift_ref[...], 0.0)


def block_forward(x_nchw, w_oihw, b, gamma, beta):
    """NCHW in / NCHW out, matching the PyTorch module's forward."""
    del b  # per-channel conv bias cancels exactly under training-mode BatchNorm
    N, Cin, H, W = x_nchw.shape
    Cout = w_oihw.shape[0]
    HW = H * W
    K9 = 9 * Cin
    pad = W + 1

    # NCHW stays NCHW end-to-end: flatten spatial (free) + zero-extend the flat
    # axis by W+1 on each side so each tap is a contiguous slice with stride W.
    x_flat = x_nchw.reshape(N, Cin, HW).astype(jnp.bfloat16)
    x_ext = jnp.pad(x_flat, ((0, 0), (0, 0), (pad, pad)))

    # weights (O,I,kh,kw) -> (O,kh,kw,I) -> (Cout, 9*Cin), bf16 for the MXU
    w_k = jnp.transpose(w_oihw, (0, 2, 3, 1)).reshape(Cout, K9).astype(jnp.bfloat16)

    # column-boundary masks (row boundaries are handled by the zero extension)
    col = jnp.tile(jnp.arange(W, dtype=jnp.int32), H)                      # (HW,)
    col_mask = jnp.stack([col >= 1, col <= W - 2]).astype(jnp.bfloat16)    # (2, HW)

    grid = (N,)
    x_spec = pl.BlockSpec((1, Cin, HW + 2 * pad), lambda n: (n, 0, 0))
    w_spec = pl.BlockSpec((Cout, K9), lambda n: (0, 0))
    m_spec = pl.BlockSpec((2, HW), lambda n: (0, 0))
    stat_spec = pl.BlockSpec((1, Cout, 1), lambda n: (n, 0, 0))
    vec_spec = pl.BlockSpec((Cout, 1), lambda n: (0, 0))
    scratch = [pltpu.VMEM((K9, HW), jnp.bfloat16)]
    parallel = pltpu.CompilerParams(dimension_semantics=("parallel",))

    # ---- pass 1: per-image statistics only (no conv intermediate hits HBM) ----
    sums, sqs = pl.pallas_call(
        functools.partial(_stats_kernel, img_w=W),
        out_shape=(jax.ShapeDtypeStruct((N, Cout, 1), jnp.float32),
                   jax.ShapeDtypeStruct((N, Cout, 1), jnp.float32)),
        grid=grid,
        in_specs=[x_spec, w_spec, m_spec],
        out_specs=(stat_spec, stat_spec),
        scratch_shapes=scratch,
        compiler_params=parallel,
    )(x_ext, w_k, col_mask)

    # ---- tiny (Cout, 1) BN fold: scale = gamma*inv_std, shift = beta - mean*scale
    m = float(N * HW)
    mean = jnp.sum(sums, axis=0) / m                                   # (Cout, 1)
    var = jnp.maximum(jnp.sum(sqs, axis=0) / m - mean * mean, 0.0)     # one-pass, clamped
    inv_std = lax.rsqrt(var + EPS)
    scale = gamma.astype(jnp.float32).reshape(Cout, 1) * inv_std
    shift = beta.astype(jnp.float32).reshape(Cout, 1) - mean * scale

    # ---- pass 2: recomputed conv fused with BN affine + ReLU ----
    out_flat = pl.pallas_call(
        functools.partial(_conv_bn_relu_kernel, img_w=W),
        out_shape=jax.ShapeDtypeStruct((N, Cout, HW), jnp.float32),
        grid=grid,
        in_specs=[x_spec, w_spec, m_spec, vec_spec, vec_spec],
        out_specs=pl.BlockSpec((1, Cout, HW), lambda n: (n, 0, 0)),
        scratch_shapes=scratch,
        compiler_params=parallel,
    )(x_ext, w_k, col_mask, scale, shift)

    return out_flat.reshape(N, Cout, H, W)   # free reshape: already NCHW layout


def block_reference(x_nchw, w_oihw, b, gamma, beta):
    """Pure-JAX reference mirroring PyTorch semantics (training-mode BN, f32)."""
    y = lax.conv_general_dilated(
        x_nchw.astype(jnp.float32), w_oihw.astype(jnp.float32),
        window_strides=(1, 1), padding="SAME",
        dimension_numbers=("NCHW", "OIHW", "NCHW"))
    y = y + b.reshape(1, -1, 1, 1)
    mean = jnp.mean(y, axis=(0, 2, 3), keepdims=True)
    var = jnp.var(y, axis=(0, 2, 3), keepdims=True)   # biased, like PyTorch BN fwd
    y_hat = (y - mean) / jnp.sqrt(var + EPS)
    out = y_hat * gamma.reshape(1, -1, 1, 1) + beta.reshape(1, -1, 1, 1)
    return jnp.maximum(out, 0.0)


if __name__ == "__main__":
    # Small shapes consistent with the module: Block(in_ch=4, out_ch=8), 16x16 maps.
    N, Cin, Cout, H, W = 2, 4, 8, 16, 16

    key = jax.random.PRNGKey(0)
    k_x, k_w, k_b, k_g, k_be = jax.random.split(key, 5)

    x = jax.random.normal(k_x, (N, Cin, H, W), dtype=jnp.float32)
    w = 0.1 * jax.random.normal(k_w, (Cout, Cin, 3, 3), dtype=jnp.float32)  # OIHW
    b = 0.1 * jax.random.normal(k_b, (Cout,), dtype=jnp.float32)
    gamma = 1.0 + 0.1 * jax.random.normal(k_g, (Cout,), dtype=jnp.float32)
    beta = 0.1 * jax.random.normal(k_be, (Cout,), dtype=jnp.float32)

    out = jax.block_until_ready(jax.jit(block_forward)(x, w, b, gamma, beta))
    ref = jax.block_until_ready(jax.jit(block_reference)(x, w, b, gamma, beta))

    assert out.shape == (N, Cout, H, W), out.shape
    # bf16 MXU operands (f32 accumulation) -> tolerance relaxed vs f32 reference.
    max_err = float(jnp.max(jnp.abs(out - ref)))
    assert max_err < 5e-2, f"mismatch vs reference: max abs err {max_err}"

    print("KERNEL_OK")
</pallas_src>

<mosaic_0001>
module attributes {stable_mosaic.version = 11 : i64} {
  func.func @_stats_kernel(%arg0: i32, %arg1: memref<1x4x290xbf16, #tpu.memory_space<vmem>>, %arg2: memref<8x36xbf16, #tpu.memory_space<vmem>>, %arg3: memref<2x256xbf16, #tpu.memory_space<vmem>>, %arg4: memref<1x8x1xf32, #tpu.memory_space<vmem>>, %arg5: memref<1x8x1xf32, #tpu.memory_space<vmem>>, %arg6: memref<36x256xbf16, #tpu.memory_space<vmem>>) attributes {dimension_semantics = [#tpu.dimension_semantics<parallel>], iteration_bounds = array<i64: 2>, scalar_prefetch = 0 : i64, scratch_operands = 1 : i64, tpu.core_type = #tpu.core_type<tc>, window_params = [{transform_indices = @transform_0, window_bounds = array<i64: 1, 4, 290>}, {pipeline_mode = #tpu.pipeline_mode<synchronous>, transform_indices = @transform_1, window_bounds = array<i64: 8, 36>}, {pipeline_mode = #tpu.pipeline_mode<synchronous>, transform_indices = @transform_2, window_bounds = array<i64: 2, 256>}, {transform_indices = @transform_3, window_bounds = array<i64: 1, 8, 1>}, {transform_indices = @transform_4, window_bounds = array<i64: 1, 8, 1>}]} {
    %c0 = arith.constant 0 : index
    %c0_0 = arith.constant 0 : index
    %c0_1 = arith.constant 0 : index
    %0 = vector.load %arg1[%c0, %c0_0, %c0_1] : memref<1x4x290xbf16, #tpu.memory_space<vmem>>, vector<1x4x290xbf16>
    %1 = vector.shape_cast %0 : vector<1x4x290xbf16> to vector<4x290xbf16>
    %c0_2 = arith.constant 0 : index
    %c0_3 = arith.constant 0 : index
    %2 = vector.load %arg3[%c0_2, %c0_3] : memref<2x256xbf16, #tpu.memory_space<vmem>>, vector<1x256xbf16>
    %c1 = arith.constant 1 : index
    %c0_4 = arith.constant 0 : index
    %3 = vector.load %arg3[%c1, %c0_4] : memref<2x256xbf16, #tpu.memory_space<vmem>>, vector<1x256xbf16>
    %4 = vector.extract_strided_slice %1 {offsets = [0, 0], sizes = [4, 256], strides = [1, 1]} : vector<4x290xbf16> to vector<4x256xbf16>
    %5 = vector.broadcast %2 : vector<1x256xbf16> to vector<4x256xbf16>
    %6 = arith.mulf %4, %5 : vector<4x256xbf16>
    %c0_5 = arith.constant 0 : index
    %c0_6 = arith.constant 0 : index
    %7 = vector.load %arg6[%c0_5, %c0_6] : memref<36x256xbf16, #tpu.memory_space<vmem>>, vector<4x256xbf16>
    tpu.vector_store %arg6[%c0_5, %c0_6], %6 {strides = array<i32>} : memref<36x256xbf16, #tpu.memory_space<vmem>>, vector<4x256xbf16>,
    %8 = vector.extract_strided_slice %1 {offsets = [0, 1], sizes = [4, 256], strides = [1, 1]} : vector<4x290xbf16> to vector<4x256xbf16>
    %c4 = arith.constant 4 : index
    %c0_7 = arith.constant 0 : index
    %9 = vector.load %arg6[%c4, %c0_7] : memref<36x256xbf16, #tpu.memory_space<vmem>>, vector<4x256xbf16>
    tpu.vector_store %arg6[%c4, %c0_7], %8 {strides = array<i32>} : memref<36x256xbf16, #tpu.memory_space<vmem>>, vector<4x256xbf16>,
    %10 = vector.extract_strided_slice %1 {offsets = [0, 2], sizes = [4, 256], strides = [1, 1]} : vector<4x290xbf16> to vector<4x256xbf16>
    %11 = vector.broadcast %3 : vector<1x256xbf16> to vector<4x256xbf16>
    %12 = arith.mulf %10, %11 : vector<4x256xbf16>
    %c8 = arith.constant 8 : index
    %c0_8 = arith.constant 0 : index
    %13 = vector.load %arg6[%c8, %c0_8] : memref<36x256xbf16, #tpu.memory_space<vmem>>, vector<4x256xbf16>
    tpu.vector_store %arg6[%c8, %c0_8], %12 {strides = array<i32>} : memref<36x256xbf16, #tpu.memory_space<vmem>>, vector<4x256xbf16>,
    %14 = vector.extract_strided_slice %1 {offsets = [0, 16], sizes = [4, 256], strides = [1, 1]} : vector<4x290xbf16> to vector<4x256xbf16>
    %15 = vector.broadcast %2 : vector<1x256xbf16> to vector<4x256xbf16>
    %16 = arith.mulf %14, %15 : vector<4x256xbf16>
    %c12 = arith.constant 12 : index
    %c0_9 = arith.constant 0 : index
    %17 = vector.load %arg6[%c12, %c0_9] : memref<36x256xbf16, #tpu.memory_space<vmem>>, vector<4x256xbf16>
    tpu.vector_store %arg6[%c12, %c0_9], %16 {strides = array<i32>} : memref<36x256xbf16, #tpu.memory_space<vmem>>, vector<4x256xbf16>,
    %18 = vector.extract_strided_slice %1 {offsets = [0, 17], sizes = [4, 256], strides = [1, 1]} : vector<4x290xbf16> to vector<4x256xbf16>
    %c16 = arith.constant 16 : index
    %c0_10 = arith.constant 0 : index
    %19 = vector.load %arg6[%c16, %c0_10] : memref<36x256xbf16, #tpu.memory_space<vmem>>, vector<4x256xbf16>
    tpu.vector_store %arg6[%c16, %c0_10], %18 {strides = array<i32>} : memref<36x256xbf16, #tpu.memory_space<vmem>>, vector<4x256xbf16>,
    %20 = vector.extract_strided_slice %1 {offsets = [0, 18], sizes = [4, 256], strides = [1, 1]} : vector<4x290xbf16> to vector<4x256xbf16>
    %21 = vector.broadcast %3 : vector<1x256xbf16> to vector<4x256xbf16>
    %22 = arith.mulf %20, %21 : vector<4x256xbf16>
    %c20 = arith.constant 20 : index
    %c0_11 = arith.constant 0 : index
    %23 = vector.load %arg6[%c20, %c0_11] : memref<36x256xbf16, #tpu.memory_space<vmem>>, vector<4x256xbf16>
    tpu.vector_store %arg6[%c20, %c0_11], %22 {strides = array<i32>} : memref<36x256xbf16, #tpu.memory_space<vmem>>, vector<4x256xbf16>,
    %24 = vector.extract_strided_slice %1 {offsets = [0, 32], sizes = [4, 256], strides = [1, 1]} : vector<4x290xbf16> to vector<4x256xbf16>
    %25 = vector.broadcast %2 : vector<1x256xbf16> to vector<4x256xbf16>
    %26 = arith.mulf %24, %25 : vector<4x256xbf16>
    %c24 = arith.constant 24 : index
    %c0_12 = arith.constant 0 : index
    %27 = vector.load %arg6[%c24, %c0_12] : memref<36x256xbf16, #tpu.memory_space<vmem>>, vector<4x256xbf16>
    tpu.vector_store %arg6[%c24, %c0_12], %26 {strides = array<i32>} : memref<36x256xbf16, #tpu.memory_space<vmem>>, vector<4x256xbf16>,
    %28 = vector.extract_strided_slice %1 {offsets = [0, 33], sizes = [4, 256], strides = [1, 1]} : vector<4x290xbf16> to vector<4x256xbf16>
    %c28 = arith.constant 28 : index
    %c0_13 = arith.constant 0 : index
    %29 = vector.load %arg6[%c28, %c0_13] : memref<36x256xbf16, #tpu.memory_space<vmem>>, vector<4x256xbf16>
    tpu.vector_store %arg6[%c28, %c0_13], %28 {strides = array<i32>} : memref<36x256xbf16, #tpu.memory_space<vmem>>, vector<4x256xbf16>,
    %30 = vector.extract_strided_slice %1 {offsets = [0, 34], sizes = [4, 256], strides = [1, 1]} : vector<4x290xbf16> to vector<4x256xbf16>
    %31 = vector.broadcast %3 : vector<1x256xbf16> to vector<4x256xbf16>
    %32 = arith.mulf %30, %31 : vector<4x256xbf16>
    %c32 = arith.constant 32 : index
    %c0_14 = arith.constant 0 : index
    %33 = vector.load %arg6[%c32, %c0_14] : memref<36x256xbf16, #tpu.memory_space<vmem>>, vector<4x256xbf16>
    tpu.vector_store %arg6[%c32, %c0_14], %32 {strides = array<i32>} : memref<36x256xbf16, #tpu.memory_space<vmem>>, vector<4x256xbf16>,
    %c0_15 = arith.constant 0 : index
    %c0_16 = arith.constant 0 : index
    %34 = vector.load %arg2[%c0_15, %c0_16] : memref<8x36xbf16, #tpu.memory_space<vmem>>, vector<8x36xbf16>
    %c0_17 = arith.constant 0 : index
    %c0_18 = arith.constant 0 : index
    %35 = vector.load %arg6[%c0_17, %c0_18] : memref<36x256xbf16, #tpu.memory_space<vmem>>, vector<36x256xbf16>
    %cst = arith.constant dense<0.000000e+00> : vector<8x256xf32>
    %36 = tpu.matmul %34, %35, %cst {dimension_numbers = #tpu.dot_dimension_numbers<[1], [0], [0], [1], [0, 0, 1, 1], [], []>} : vector<8x36xbf16>, vector<36x256xbf16>, vector<8x256xf32> -> vector<8x256xf32>
    %cst_19 = arith.constant dense<0.000000e+00> : vector<8xf32>
    %37 = vector.multi_reduction <add>, %36, %cst_19 [1] : vector<8x256xf32> to vector<8xf32>
    %38 = vector.shape_cast %37 : vector<8xf32> to vector<8x1xf32>
    %c0_20 = arith.constant 0 : index
    %c0_21 = arith.constant 0 : index
    %c0_22 = arith.constant 0 : index
    %39 = vector.load %arg4[%c0_20, %c0_21, %c0_22] : memref<1x8x1xf32, #tpu.memory_space<vmem>>, vector<1x8x1xf32>
    %40 = vector.shape_cast %39 : vector<1x8x1xf32> to vector<8x1xf32>
    %41 = vector.shape_cast %38 : vector<8x1xf32> to vector<1x8x1xf32>
    tpu.vector_store %arg4[%c0_20, %c0_21, %c0_22], %41 {strides = array<i32>} : memref<1x8x1xf32, #tpu.memory_space<vmem>>, vector<1x8x1xf32>,
    %42 = arith.mulf %36, %36 : vector<8x256xf32>
    %cst_23 = arith.constant dense<0.000000e+00> : vector<8xf32>
    %43 = vector.multi_reduction <add>, %42, %cst_23 [1] : vector<8x256xf32> to vector<8xf32>
    %44 = vector.shape_cast %43 : vector<8xf32> to vector<8x1xf32>
    %c0_24 = arith.constant 0 : index
    %c0_25 = arith.constant 0 : index
    %c0_26 = arith.constant 0 : index
    %45 = vector.load %arg5[%c0_24, %c0_25, %c0_26] : memref<1x8x1xf32, #tpu.memory_space<vmem>>, vector<1x8x1xf32>
    %46 = vector.shape_cast %45 : vector<1x8x1xf32> to vector<8x1xf32>
    %47 = vector.shape_cast %44 : vector<8x1xf32> to vector<1x8x1xf32>
    tpu.vector_store %arg5[%c0_24, %c0_25, %c0_26], %47 {strides = array<i32>} : memref<1x8x1xf32, #tpu.memory_space<vmem>>, vector<1x8x1xf32>,
    return
  }
  func.func @transform_0(%arg0: i32) -> (i32, i32, i32) {
    %c0_i32 = arith.constant 0 : i32
    %c0_i32_0 = arith.constant 0 : i32
    %c0_i32_1 = arith.constant 0 : i32
    return %arg0, %c0_i32, %c0_i32_0 : i32, i32, i32
  }
  func.func @transform_1(%arg0: i32) -> (i32, i32) {
    %c0_i32 = arith.constant 0 : i32
    %c0_i32_0 = arith.constant 0 : i32
    %c0_i32_1 = arith.constant 0 : i32
    return %c0_i32, %c0_i32_0 : i32, i32
  }
  func.func @transform_2(%arg0: i32) -> (i32, i32) {
    %c0_i32 = arith.constant 0 : i32
    %c0_i32_0 = arith.constant 0 : i32
    %c0_i32_1 = arith.constant 0 : i32
    return %c0_i32, %c0_i32_0 : i32, i32
  }
  func.func @transform_3(%arg0: i32) -> (i32, i32, i32) {
    %c0_i32 = arith.constant 0 : i32
    %c0_i32_0 = arith.constant 0 : i32
    %c0_i32_1 = arith.constant 0 : i32
    return %arg0, %c0_i32, %c0_i32_0 : i32, i32, i32
  }
  func.func @transform_4(%arg0: i32) -> (i32, i32, i32) {
    %c0_i32 = arith.constant 0 : i32
    %c0_i32_0 = arith.constant 0 : i32
    %c0_i32_1 = arith.constant 0 : i32
    return %arg0, %c0_i32, %c0_i32_0 : i32, i32, i32
  }
}

module attributes {stable_mosaic.version = 11 : i64} {
  func.func @_conv_bn_relu_kernel(%arg0: i32, %arg1: memref<1x4x290xbf16, #tpu.memory_space<vmem>>, %arg2: memref<8x36xbf16, #tpu.memory_space<vmem>>, %arg3: memref<2x256xbf16, #tpu.memory_space<vmem>>, %arg4: memref<8x1xf32, #tpu.memory_space<vmem>>, %arg5: memref<8x1xf32, #tpu.memory_space<vmem>>, %arg6: memref<1x8x256xf32, #tpu.memory_space<vmem>>, %arg7: memref<36x256xbf16, #tpu.memory_space<vmem>>) attributes {dimension_semantics = [#tpu.dimension_semantics<parallel>], iteration_bounds = array<i64: 2>, scalar_prefetch = 0 : i64, scratch_operands = 1 : i64, tpu.core_type = #tpu.core_type<tc>, window_params = [{transform_indices = @transform_0, window_bounds = array<i64: 1, 4, 290>}, {pipeline_mode = #tpu.pipeline_mode<synchronous>, transform_indices = @transform_1, window_bounds = array<i64: 8, 36>}, {pipeline_mode = #tpu.pipeline_mode<synchronous>, transform_indices = @transform_2, window_bounds = array<i64: 2, 256>}, {pipeline_mode = #tpu.pipeline_mode<synchronous>, transform_indices = @transform_3, window_bounds = array<i64: 8, 1>}, {pipeline_mode = #tpu.pipeline_mode<synchronous>, transform_indices = @transform_4, window_bounds = array<i64: 8, 1>}, {transform_indices = @transform_5, window_bounds = array<i64: 1, 8, 256>}]} {
    %c0 = arith.constant 0 : index
    %c0_0 = arith.constant 0 : index
    %c0_1 = arith.constant 0 : index
    %0 = vector.load %arg1[%c0, %c0_0, %c0_1] : memref<1x4x290xbf16, #tpu.memory_space<vmem>>, vector<1x4x290xbf16>
    %1 = vector.shape_cast %0 : vector<1x4x290xbf16> to vector<4x290xbf16>
    %c0_2 = arith.constant 0 : index
    %c0_3 = arith.constant 0 : index
    %2 = vector.load %arg3[%c0_2, %c0_3] : memref<2x256xbf16, #tpu.memory_space<vmem>>, vector<1x256xbf16>
    %c1 = arith.constant 1 : index
    %c0_4 = arith.constant 0 : index
    %3 = vector.load %arg3[%c1, %c0_4] : memref<2x256xbf16, #tpu.memory_space<vmem>>, vector<1x256xbf16>
    %4 = vector.extract_strided_slice %1 {offsets = [0, 0], sizes = [4, 256], strides = [1, 1]} : vector<4x290xbf16> to vector<4x256xbf16>
    %5 = vector.broadcast %2 : vector<1x256xbf16> to vector<4x256xbf16>
    %6 = arith.mulf %4, %5 : vector<4x256xbf16>
    %c0_5 = arith.constant 0 : index
    %c0_6 = arith.constant 0 : index
    %7 = vector.load %arg7[%c0_5, %c0_6] : memref<36x256xbf16, #tpu.memory_space<vmem>>, vector<4x256xbf16>
    tpu.vector_store %arg7[%c0_5, %c0_6], %6 {strides = array<i32>} : memref<36x256xbf16, #tpu.memory_space<vmem>>, vector<4x256xbf16>,
    %8 = vector.extract_strided_slice %1 {offsets = [0, 1], sizes = [4, 256], strides = [1, 1]} : vector<4x290xbf16> to vector<4x256xbf16>
    %c4 = arith.constant 4 : index
    %c0_7 = arith.constant 0 : index
    %9 = vector.load %arg7[%c4, %c0_7] : memref<36x256xbf16, #tpu.memory_space<vmem>>, vector<4x256xbf16>
    tpu.vector_store %arg7[%c4, %c0_7], %8 {strides = array<i32>} : memref<36x256xbf16, #tpu.memory_space<vmem>>, vector<4x256xbf16>,
    %10 = vector.extract_strided_slice %1 {offsets = [0, 2], sizes = [4, 256], strides = [1, 1]} : vector<4x290xbf16> to vector<4x256xbf16>
    %11 = vector.broadcast %3 : vector<1x256xbf16> to vector<4x256xbf16>
    %12 = arith.mulf %10, %11 : vector<4x256xbf16>
    %c8 = arith.constant 8 : index
    %c0_8 = arith.constant 0 : index
    %13 = vector.load %arg7[%c8, %c0_8] : memref<36x256xbf16, #tpu.memory_space<vmem>>, vector<4x256xbf16>
    tpu.vector_store %arg7[%c8, %c0_8], %12 {strides = array<i32>} : memref<36x256xbf16, #tpu.memory_space<vmem>>, vector<4x256xbf16>,
    %14 = vector.extract_strided_slice %1 {offsets = [0, 16], sizes = [4, 256], strides = [1, 1]} : vector<4x290xbf16> to vector<4x256xbf16>
    %15 = vector.broadcast %2 : vector<1x256xbf16> to vector<4x256xbf16>
    %16 = arith.mulf %14, %15 : vector<4x256xbf16>
    %c12 = arith.constant 12 : index
    %c0_9 = arith.constant 0 : index
    %17 = vector.load %arg7[%c12, %c0_9] : memref<36x256xbf16, #tpu.memory_space<vmem>>, vector<4x256xbf16>
    tpu.vector_store %arg7[%c12, %c0_9], %16 {strides = array<i32>} : memref<36x256xbf16, #tpu.memory_space<vmem>>, vector<4x256xbf16>,
    %18 = vector.extract_strided_slice %1 {offsets = [0, 17], sizes = [4, 256], strides = [1, 1]} : vector<4x290xbf16> to vector<4x256xbf16>
    %c16 = arith.constant 16 : index
    %c0_10 = arith.constant 0 : index
    %19 = vector.load %arg7[%c16, %c0_10] : memref<36x256xbf16, #tpu.memory_space<vmem>>, vector<4x256xbf16>
    tpu.vector_store %arg7[%c16, %c0_10], %18 {strides = array<i32>} : memref<36x256xbf16, #tpu.memory_space<vmem>>, vector<4x256xbf16>,
    %20 = vector.extract_strided_slice %1 {offsets = [0, 18], sizes = [4, 256], strides = [1, 1]} : vector<4x290xbf16> to vector<4x256xbf16>
    %21 = vector.broadcast %3 : vector<1x256xbf16> to vector<4x256xbf16>
    %22 = arith.mulf %20, %21 : vector<4x256xbf16>
    %c20 = arith.constant 20 : index
    %c0_11 = arith.constant 0 : index
    %23 = vector.load %arg7[%c20, %c0_11] : memref<36x256xbf16, #tpu.memory_space<vmem>>, vector<4x256xbf16>
    tpu.vector_store %arg7[%c20, %c0_11], %22 {strides = array<i32>} : memref<36x256xbf16, #tpu.memory_space<vmem>>, vector<4x256xbf16>,
    %24 = vector.extract_strided_slice %1 {offsets = [0, 32], sizes = [4, 256], strides = [1, 1]} : vector<4x290xbf16> to vector<4x256xbf16>
    %25 = vector.broadcast %2 : vector<1x256xbf16> to vector<4x256xbf16>
    %26 = arith.mulf %24, %25 : vector<4x256xbf16>
    %c24 = arith.constant 24 : index
    %c0_12 = arith.constant 0 : index
    %27 = vector.load %arg7[%c24, %c0_12] : memref<36x256xbf16, #tpu.memory_space<vmem>>, vector<4x256xbf16>
    tpu.vector_store %arg7[%c24, %c0_12], %26 {strides = array<i32>} : memref<36x256xbf16, #tpu.memory_space<vmem>>, vector<4x256xbf16>,
    %28 = vector.extract_strided_slice %1 {offsets = [0, 33], sizes = [4, 256], strides = [1, 1]} : vector<4x290xbf16> to vector<4x256xbf16>
    %c28 = arith.constant 28 : index
    %c0_13 = arith.constant 0 : index
    %29 = vector.load %arg7[%c28, %c0_13] : memref<36x256xbf16, #tpu.memory_space<vmem>>, vector<4x256xbf16>
    tpu.vector_store %arg7[%c28, %c0_13], %28 {strides = array<i32>} : memref<36x256xbf16, #tpu.memory_space<vmem>>, vector<4x256xbf16>,
    %30 = vector.extract_strided_slice %1 {offsets = [0, 34], sizes = [4, 256], strides = [1, 1]} : vector<4x290xbf16> to vector<4x256xbf16>
    %31 = vector.broadcast %3 : vector<1x256xbf16> to vector<4x256xbf16>
    %32 = arith.mulf %30, %31 : vector<4x256xbf16>
    %c32 = arith.constant 32 : index
    %c0_14 = arith.constant 0 : index
    %33 = vector.load %arg7[%c32, %c0_14] : memref<36x256xbf16, #tpu.memory_space<vmem>>, vector<4x256xbf16>
    tpu.vector_store %arg7[%c32, %c0_14], %32 {strides = array<i32>} : memref<36x256xbf16, #tpu.memory_space<vmem>>, vector<4x256xbf16>,
    %c0_15 = arith.constant 0 : index
    %c0_16 = arith.constant 0 : index
    %34 = vector.load %arg2[%c0_15, %c0_16] : memref<8x36xbf16, #tpu.memory_space<vmem>>, vector<8x36xbf16>
    %c0_17 = arith.constant 0 : index
    %c0_18 = arith.constant 0 : index
    %35 = vector.load %arg7[%c0_17, %c0_18] : memref<36x256xbf16, #tpu.memory_space<vmem>>, vector<36x256xbf16>
    %cst = arith.constant dense<0.000000e+00> : vector<8x256xf32>
    %36 = tpu.matmul %34, %35, %cst {dimension_numbers = #tpu.dot_dimension_numbers<[1], [0], [0], [1], [0, 0, 1, 1], [], []>} : vector<8x36xbf16>, vector<36x256xbf16>, vector<8x256xf32> -> vector<8x256xf32>
    %c0_19 = arith.constant 0 : index
    %c0_20 = arith.constant 0 : index
    %37 = vector.load %arg4[%c0_19, %c0_20] : memref<8x1xf32, #tpu.memory_space<vmem>>, vector<8x1xf32>
    %38 = vector.broadcast %37 : vector<8x1xf32> to vector<8x256xf32>
    %39 = arith.mulf %36, %38 : vector<8x256xf32>
    %c0_21 = arith.constant 0 : index
    %c0_22 = arith.constant 0 : index
    %40 = vector.load %arg5[%c0_21, %c0_22] : memref<8x1xf32, #tpu.memory_space<vmem>>, vector<8x1xf32>
    %41 = vector.broadcast %40 : vector<8x1xf32> to vector<8x256xf32>
    %42 = arith.addf %39, %41 : vector<8x256xf32>
    %cst_23 = arith.constant 0.000000e+00 : f32
    %43 = vector.broadcast %cst_23 : f32 to vector<8x256xf32>
    %44 = arith.maximumf %42, %43 : vector<8x256xf32>
    %c0_24 = arith.constant 0 : index
    %c0_25 = arith.constant 0 : index
    %c0_26 = arith.constant 0 : index
    %45 = vector.load %arg6[%c0_24, %c0_25, %c0_26] : memref<1x8x256xf32, #tpu.memory_space<vmem>>, vector<1x8x256xf32>
    %46 = vector.shape_cast %45 : vector<1x8x256xf32> to vector<8x256xf32>
    %47 = vector.shape_cast %44 : vector<8x256xf32> to vector<1x8x256xf32>
    tpu.vector_store %arg6[%c0_24, %c0_25, %c0_26], %47 {strides = array<i32>} : memref<1x8x256xf32, #tpu.memory_space<vmem>>, vector<1x8x256xf32>,
    return
  }
  func.func @transform_0(%arg0: i32) -> (i32, i32, i32) {
    %c0_i32 = arith.constant 0 : i32
    %c0_i32_0 = arith.constant 0 : i32
    %c0_i32_1 = arith.constant 0 : i32
    return %arg0, %c0_i32, %c0_i32_0 : i32, i32, i32
  }
  func.func @transform_1(%arg0: i32) -> (i32, i32) {
    %c0_i32 = arith.constant 0 : i32
    %c0_i32_0 = arith.constant 0 : i32
    %c0_i32_1 = arith.constant 0 : i32
    return %c0_i32, %c0_i32_0 : i32, i32
  }
  func.func @transform_2(%arg0: i32) -> (i32, i32) {
    %c0_i32 = arith.constant 0 : i32
    %c0_i32_0 = arith.constant 0 : i32
    %c0_i32_1 = arith.constant 0 : i32
    return %c0_i32, %c0_i32_0 : i32, i32
  }
  func.func @transform_3(%arg0: i32) -> (i32, i32) {
    %c0_i32 = arith.constant 0 : i32
    %c0_i32_0 = arith.constant 0 : i32
    %c0_i32_1 = arith.constant 0 : i32
    return %c0_i32, %c0_i32_0 : i32, i32
  }
  func.func @transform_4(%arg0: i32) -> (i32, i32) {
    %c0_i32 = arith.constant 0 : i32
    %c0_i32_0 = arith.constant 0 : i32
    %c0_i32_1 = arith.constant 0 : i32
    return %c0_i32, %c0_i32_0 : i32, i32
  }
  func.func @transform_5(%arg0: i32) -> (i32, i32, i32) {
    %c0_i32 = arith.constant 0 : i32
    %c0_i32_0 = arith.constant 0 : i32
    %c0_i32_1 = arith.constant 0 : i32
    return %arg0, %c0_i32, %c0_i32_0 : i32, i32, i32
  }
}

</mosaic_0001>

<llo_original>
// kernel: block_forward.3
$region0: #{block_forward.3}
  #allocation0 [shape = 'u32[]', space=smem, size = 0x4, offset = 0x4, fixed_abs, tag = 'smem constant byte address 0x4 - core index']
  #allocation1 [shape = 'u32[144,128]{1,0:T(1,128)}', space=vmem, size = 0x12000, scoped, tag = 'internal scratch']
  #allocation2 [shape = 'bf16[36,256]{1,0:T(8,128)(2,1)}', space=vmem, size = 0x5000, scoped, tag = 'scratch operand']
  %s0 = inlined_call_operand.vmem [shape: bf16[2,4,290], index: 0, kind: input, shape index: {}]
  %s1 = inlined_call_operand.vmem [shape: bf16[8,36], index: 1, kind: input, shape index: {}]
  %s2 = inlined_call_operand.vmem [shape: bf16[2,256], index: 2, kind: input, shape index: {}]
  %s3 = inlined_call_operand.vmem [shape: f32[8,1], index: 3, kind: input, shape index: {}]
  %s4 = inlined_call_operand.vmem [shape: f32[8,1], index: 4, kind: input, shape index: {}]
  %s5 = inlined_call_operand.vmem [shape: f32[2,8,256], index: 5, kind: output, shape index: {}]
  %s6 = sld [smem:[#allocation0]]
  $region53: #{block_forward.3} parent=0
    _
  %s8 = ssub.s32 1, %s6
  %s9 = scalar_select 0, %s8, %s6
  loop: start=0, step=1, limit=4
  $region2: #{block_forward.3} parent=0 // loop_pre_header
    _
  $region3: #{block_forward.3} parent=0 // loop_header
    %s11 = sphi 0, %s15
    %p12 = scmp.ge.s32.totalorder %s11, 4
    %s21 = sphi 0, %s23
    %s24 = sphi 0, %s21
    %s25 = sphi 0, %s24
    %s41 = sphi 0, %s25
    %s45 = sphi 0, %s45
    %s47 = sphi 0, %s45
    %s48 = sphi 0, %s47
    %s62 = sphi 0, %s48
    %s66 = sphi 0, %s66
    %s68 = sphi 0, %s66
    %s69 = sphi 0, %s68
    %s83 = sphi 0, %s69
    %s87 = sphi 0, %s87
    %s89 = sphi 0, %s87
    %s90 = sphi 0, %s89
    %s104 = sphi 0, %s90
    %s108 = sphi 0, %s108
    %s110 = sphi 0, %s108
    %s111 = sphi 0, %s110
    %s125 = sphi 0, %s111
    %s131 = sphi 0, %s133
    %s134 = sphi 0, %s131
    %s135 = sphi 0, %s134
    %s151 = sphi 0, %s135
  $region4: #{block_forward.3} parent=0 // loop_header_branch
    %14 = sbr.rel (%p12) target = $region8
  $region5: #{block_forward.3} parent=0 // loop_body
    %s16 = ssub.s32 %s11, 1
    %s17 = ssub.s32 %s11, 2
    %s18 = sadd.s32 %s11, 1
    %s19 = ssub.s32 %s11, %s18
    %p20 = scmp.eq.s32.totalorder %s19, 0
    %s22 = sadd.s32 %s21, 1
    %s23 = scalar_select %p20, %s21, %s22
    %p26 = pneg %p20
    %p27 = scmp.eq.s32.totalorder %s11, 1
    %p28 = por %p26, %p27
    %p29 = scmp.ne.s32.totalorder %s21, %s24
    %p30 = scmp.eq.s32.totalorder %s11, 0
    %p31 = por %p29, %p30
    %p32 = scmp.ne.s32.totalorder %s21, %s24
    %p33 = scmp.eq.s32.totalorder %s16, 1
    %p34 = por %p32, %p33
    %p35 = scmp.ne.s32.totalorder %s24, %s25
    %p36 = scmp.eq.s32.totalorder %s16, 0
    %p37 = por %p35, %p36
    %p38 = scmp.ne.s32.totalorder %s24, %s25
    %p39 = scmp.eq.s32.totalorder %s17, 1
    %p40 = por %p38, %p39
    %p42 = scmp.ne.s32.totalorder %s25, %s41
    %p43 = scmp.eq.s32.totalorder %s17, 0
    %p44 = por %p42, %p43
    %s46 = sadd.s32 %s45, 1
    %p49 = scmp.eq.s32.totalorder %s11, 1
    %p50 = scmp.ne.s32.totalorder %s45, %s47
    %p51 = scmp.eq.s32.totalorder %s11, 0
    %p52 = por %p50, %p51
    %p53 = scmp.ne.s32.totalorder %s45, %s47
    %p54 = scmp.eq.s32.totalorder %s16, 1
    %p55 = por %p53, %p54
    %p56 = scmp.ne.s32.totalorder %s47, %s48
    %p57 = scmp.eq.s32.totalorder %s16, 0
    %p58 = por %p56, %p57
    %p59 = scmp.ne.s32.totalorder %s47, %s48
    %p60 = scmp.eq.s32.totalorder %s17, 1
    %p61 = por %p59, %p60
    %p63 = scmp.ne.s32.totalorder %s48, %s62
    %p64 = scmp.eq.s32.totalorder %s17, 0
    %p65 = por %p63, %p64
    %s67 = sadd.s32 %s66, 1
    %p70 = scmp.eq.s32.totalorder %s11, 1
    %p71 = scmp.ne.s32.totalorder %s66, %s68
    %p72 = scmp.eq.s32.totalorder %s11, 0
    %p73 = por %p71, %p72
    %p74 = scmp.ne.s32.totalorder %s66, %s68
    %p75 = scmp.eq.s32.totalorder %s16, 1
    %p76 = por %p74, %p75
    %p77 = scmp.ne.s32.totalorder %s68, %s69
    %p78 = scmp.eq.s32.totalorder %s16, 0
    %p79 = por %p77, %p78
    %p80 = scmp.ne.s32.totalorder %s68, %s69
    %p81 = scmp.eq.s32.totalorder %s17, 1
    %p82 = por %p80, %p81
    %p84 = scmp.ne.s32.totalorder %s69, %s83
    %p85 = scmp.eq.s32.totalorder %s17, 0
    %p86 = por %p84, %p85
    %s88 = sadd.s32 %s87, 1
    %p91 = scmp.eq.s32.totalorder %s11, 1
    %p92 = scmp.ne.s32.totalorder %s87, %s89
    %p93 = scmp.eq.s32.totalorder %s11, 0
    %p94 = por %p92, %p93
    %p95 = scmp.ne.s32.totalorder %s87, %s89
    %p96 = scmp.eq.s32.totalorder %s16, 1
    %p97 = por %p95, %p96
    %p98 = scmp.ne.s32.totalorder %s89, %s90
    %p99 = scmp.eq.s32.totalorder %s16, 0
    %p100 = por %p98, %p99
    %p101 = scmp.ne.s32.totalorder %s89, %s90
    %p102 = scmp.eq.s32.totalorder %s17, 1
    %p103 = por %p101, %p102
    %p105 = scmp.ne.s32.totalorder %s90, %s104
    %p106 = scmp.eq.s32.totalorder %s17, 0
    %p107 = por %p105, %p106
    %s109 = sadd.s32 %s108, 1
    %p112 = scmp.eq.s32.totalorder %s11, 1
    %p113 = scmp.ne.s32.totalorder %s108, %s110
    %p114 = scmp.eq.s32.totalorder %s11, 0
    %p115 = por %p113, %p114
    %p116 = scmp.ne.s32.totalorder %s108, %s110
    %p117 = scmp.eq.s32.totalorder %s16, 1
    %p118 = por %p116, %p117
    %p119 = scmp.ne.s32.totalorder %s110, %s111
    %p120 = scmp.eq.s32.totalorder %s16, 0
    %p121 = por %p119, %p120
    %p122 = scmp.ne.s32.totalorder %s110, %s111
    %p123 = scmp.eq.s32.totalorder %s17, 1
    %p124 = por %p122, %p123
    %p126 = scmp.ne.s32.totalorder %s111, %s125
    %p127 = scmp.eq.s32.totalorder %s17, 0
    %p128 = por %p126, %p127
    %s129 = ssub.s32 %s11, %s18
    %p130 = scmp.eq.s32.totalorder %s129, 0
    %s132 = sadd.s32 %s131, 1
    %s133 = scalar_select %p130, %s131, %s132
    %p136 = pneg %p130
    %p137 = scmp.eq.s32.totalorder %s11, 1
    %p138 = por %p136, %p137
    %p139 = scmp.ne.s32.totalorder %s131, %s134
    %p140 = scmp.eq.s32.totalorder %s11, 0
    %p141 = por %p139, %p140
    %p142 = scmp.ne.s32.totalorder %s131, %s134
    %p143 = scmp.eq.s32.totalorder %s16, 1
    %p144 = por %p142, %p143
    %p145 = scmp.ne.s32.totalorder %s134, %s135
    %p146 = scmp.eq.s32.totalorder %s16, 0
    %p147 = por %p145, %p146
    %p148 = scmp.ne.s32.totalorder %s134, %s135
    %p149 = scmp.eq.s32.totalorder %s17, 1
    %p150 = por %p148, %p149
    %p152 = scmp.ne.s32.totalorder %s135, %s151
    %p153 = scmp.eq.s32.totalorder %s17, 0
    %p154 = por %p152, %p153
    %p155 = scmp.le.s32.totalorder 1, %s11
    %p156 = scmp.lt.s32.totalorder %s11, 3
    %p157 = pnand %p155, %p156
    %p158 = pneg %p157
    // Predicated region
    $region9: #{block_forward.3} parent=5 // pred_check
      _
    $region10: #{block_forward.3} parent=5 // pred_check_branch
      %160 = sbr.rel (%p157) target = $region12
    $region11: #{block_forward.3} parent=5 // pred_region
      %s161 = ssub.s32 %s11, 1
      // Predicated region
      $region13: #{block_forward.3} parent=11 // pred_check
        %p162 = pneg %p58
      $region14: #{block_forward.3} parent=11 // pred_check_branch
        %164 = sbr.rel (%p162) target = $region16
      $region15: #{block_forward.3} parent=11 // pred_region
        _
      $region16: #{block_forward.3} parent=11 // pred_fallthru
        _
      // Predicated region
      $region17: #{block_forward.3} parent=11 // pred_check
        %p165 = pneg %p79
      $region18: #{block_forward.3} parent=11 // pred_check_branch
        %167 = sbr.rel (%p165) target = $region20
      $region19: #{block_forward.3} parent=11 // pred_region
        _
      $region20: #{block_forward.3} parent=11 // pred_fallthru
        _
      // Predicated region
      $region21: #{block_forward.3} parent=11 // pred_check
        %p168 = pneg %p100
      $region22: #{block_forward.3} parent=11 // pred_check_branch
        %170 = sbr.rel (%p168) target = $region24
      $region23: #{block_forward.3} parent=11 // pred_region
        _
      $region24: #{block_forward.3} parent=11 // pred_fallthru
        _
      // Predicated region
      $region25: #{block_forward.3} parent=11 // pred_check
        %p171 = pneg %p121
      $region26: #{block_forward.3} parent=11 // pred_check_branch
        %173 = sbr.rel (%p171) target = $region28
      $region27: #{block_forward.3} parent=11 // pred_region
        _
      $region28: #{block_forward.3} parent=11 // pred_fallthru
        _
    $region12: #{block_forward.3} parent=5 // pred_fallthru
      _
    %p174 = scmp.lt.s32.totalorder %s11, 2
    // Predicated region
    $region29: #{block_forward.3} parent=5 // pred_check
      %p175 = pneg %p174
    $region30: #{block_forward.3} parent=5 // pred_check_branch
      %177 = sbr.rel (%p175) target = $region32
    $region31: #{block_forward.3} parent=5 // pred_region
      // Predicated region
      $region33: #{block_forward.3} parent=31 // pred_check
        %p178 = pneg %p31
      $region34: #{block_forward.3} parent=31 // pred_check_branch
        %180 = sbr.rel (%p178) target = $region36
      $region35: #{block_forward.3} parent=31 // pred_region
        %p181 = scmp.lt.s32.totalorder %s11, 1
        %s182 = scalar_select %p181, %s11, 1
        %s183 = smul.addr %s182, 3
        %s184 = smul.addr %s183, 2
        %s185 = scalar_lea.vmem %s0, %s184
      $region36: #{block_forward.3} parent=31 // pred_fallthru
        _
    $region32: #{block_forward.3} parent=5 // pred_fallthru
      _
    %p186 = scmp.le.s32.totalorder 1, %s11
    %p187 = scmp.lt.s32.totalorder %s11, 3
    %p188 = pnand %p186, %p187
    %p189 = pneg %p188
    // Predicated region
    $region37: #{block_forward.3} parent=5 // pred_check
      _
    $region38: #{block_forward.3} parent=5 // pred_check_branch
      %191 = sbr.rel (%p188) target = $region40
    $region39: #{block_forward.3} parent=5 // pred_region
      %s192 = ssub.s32 %s11, 1
      %p193 = scmp.lt.s32.totalorder %s16, 1
      %s194 = scalar_select %p193, %s16, 1
      %s195 = smul.addr %s194, 3
      %s196 = smul.addr %s195, 2
      %s197 = scalar_lea.vmem %s0, %s196
      %p198 = pneg %p37
      %p199 = pneg %p34
      %p200 = pneg %p58
      %p201 = pneg %p55
      %p202 = pneg %p79
      %p203 = pneg %p76
      %p204 = pneg %p100
      %p205 = pneg %p97
      %p206 = pneg %p121
      %p207 = pneg %p118
      %p208 = pneg %p147
      %p209 = pneg %p144
      %p210 = scmp.lt.s32.totalorder %s16, 1
      %s211 = scalar_select %p210, %s16, 1
      %s212 = smul.addr %s211, 2
      %s213 = smul.addr %s212, 8
      %s214 = scalar_lea.vmem %s5, %s213
      %p215 = scmp.lt.s32.totalorder %s16, 1
      %s216 = scalar_select %p215, %s16, 1
      %s217 = smul.addr %s216, 3
      %s218 = smul.addr %s217, 2
      %s219 = scalar_lea.vmem %s0, %s218
      %p220 = scmp.lt.s32.totalorder %s16, 1
      %s221 = scalar_select %p220, %s16, 1
      %s222 = smul.addr %s221, 2
      %s223 = smul.addr %s222, 8
      %s224 = scalar_lea.vmem %s5, %s223
      %v226 = vld [vmem:[%s219] sm:$0x3f]
      %v227 = vld [vmem:[%s2] sm:$0x3]
      %v230 = vunpack.c.l.s4 1966171168
      %v231 = vunpack.c.0.s8 %v230
      %v232 = vlaneseq
      %v233 = vshrl.u32 %v232, 7
      %v234 = vsub.s32 %v231, %v233
      %v235 = vrot.slane %v227, %v234
      %v236 = vcombine.high %v235, %v235
      %v238 = vunpack.c.l.s4 1966171168
      %v239 = vunpack.c.0.s8 %v238
      %v240 = vlaneseq
      %v241 = vshrl.u32 %v240, 7
      %v242 = vsub.s32 %v239, %v241
      %v243 = vrot.slane %v235, %v242
      %v245 = vunpack.c.l.s4 1966171168
      %v246 = vunpack.c.0.s8 %v245
      %v247 = vlaneseq
      %v248 = vshrl.u32 %v247, 7
      %v249 = vsub.s32 %v246, %v248
      %v250 = vrot.slane %v236, %v249
      %v252 = vpack.i.b16 %v243, %v243
      %v254 = vlaneseq
      %v255 = vshrl.u32 %v254, 7
      %v256 = vsub.s32 0, %v255
      %v257 = vrot.slane %v252, %v256
      %v259 = vpack.i.b16 %v250, %v250
      %v261 = vlaneseq
      %v262 = vshrl.u32 %v261, 7
      %v263 = vsub.s32 0, %v262
      %v264 = vrot.slane %v259, %v263
      %v267 = vcombine.low %v257, %v264
      %v269 = vunpack.c.l.s4 1983009808
      %v270 = vunpack.c.0.s8 %v269
      %v271 = vlaneseq
      %v272 = vshrl.u32 %v271, 7
      %v273 = vsub.s32 %v270, %v272
      %v274 = vrot.slane %v267, %v273
      %v276 = vmul.bf16 %v226, %v274
      %v279 = vunpack.c.l.s4 1983009808
      %v280 = vunpack.c.0.s8 %v279
      %v281 = vlaneseq
      %v282 = vshrl.u32 %v281, 7
      %v283 = vsub.s32 %v280, %v282
      %v284 = vrot.slane %v276, %v283
      %286 = vst [vmem:[#allocation2] sm:$0x33] %v284
      %v288 = vcombine.low %v226, %v226
      %v290 = vunpack.c.l.s4 1983009808
      %v291 = vunpack.c.0.s8 %v290
      %v292 = vlaneseq
      %v293 = vshrl.u32 %v292, 7
      %v294 = vsub.s32 %v291, %v293
      %v295 = vrot.slane %v288, %v294
      %v297 = vunpack.c.l.s4 1983009808
      %v298 = vunpack.c.0.s8 %v297
      %v299 = vlaneseq
      %v300 = vshrl.u32 %v299, 7
      %v301 = vsub.s32 %v298, %v300
      %v302 = vrot.slane %v226, %v301
      %303 = vrot.lane.b32.xlu0 %v295, 127
      %v304 = vpop.permute.xlu0 %303
      %305 = vrot.lane.b32.xlu0 %v302, 127
      %v306 = vpop.permute.xlu0 %305
      %v307 = vrot.slane %v304, 4
      %v308 = vrot.slane %v306, 4
      %vm309 = vcmask 1043456
      %v310 = vsel %vm309, %v307, %v308
      %vm311 = vcmask 1039360
      %v312 = vsel %vm311, %v304, %v310
      %314 = vst [vmem:[#allocation2] sm:$0xcc] %v312
      %v315 = vshrl.u32 %v243, 16
      %v316 = vpack.i.b16 %v315, %v315
      %v318 = vlaneseq
      %v319 = vshrl.u32 %v318, 7
      %v320 = vsub.s32 0, %v319
      %v321 = vrot.slane %v316, %v320
      %v322 = vshrl.u32 %v250, 16
      %v323 = vpack.i.b16 %v322, %v322
      %v325 = vlaneseq
      %v326 = vshrl.u32 %v325, 7
      %v327 = vsub.s32 0, %v326
      %v328 = vrot.slane %v323, %v327
      %v331 = vcombine.low %v321, %v328
      %v333 = vunpack.c.l.s4 1983009808
      %v334 = vunpack.c.0.s8 %v333
      %v335 = vlaneseq
      %v336 = vshrl.u32 %v335, 7
      %v337 = vsub.s32 %v334, %v336
      %v338 = vrot.slane %v331, %v337
      %339 = vrot.lane.b32.xlu0 %v338, 2
      %v340 = vpop.permute.xlu0 %339
      %v341 = vrot.slane %v340, 6
      %vm342 = vcmask 15360
      %v343 = vsel %vm342, %v341, %v340
      %v345 = vmul.bf16 %v226, %v343
      %v347 = vcombine.high %v345, %v345
      %v349 = vunpack.c.l.s4 1983009808
      %v350 = vunpack.c.0.s8 %v349
      %v351 = vlaneseq
      %v352 = vshrl.u32 %v351, 7
      %v353 = vsub.s32 %v350, %v352
      %v354 = vrot.slane %v345, %v353
      %v356 = vunpack.c.l.s4 1983009808
      %v357 = vunpack.c.0.s8 %v356
      %v358 = vlaneseq
      %v359 = vshrl.u32 %v358, 7
      %v360 = vsub.s32 %v357, %v359
      %v361 = vrot.slane %v347, %v360
      %362 = vrot.lane.b32.xlu0 %v354, 126
      %v363 = vpop.permute.xlu0 %362
      %364 = vrot.lane.b32.xlu0 %v361, 126
      %v365 = vpop.permute.xlu0 %364
      %v366 = vrot.slane %v363, 4
      %v367 = vrot.slane %v365, 4
      %v368 = vsel %vm309, %v366, %v367
      %vm369 = vcmask 1031168
      %v370 = vsel %vm369, %v363, %v368
      %372 = vst [vmem:[#allocation2 + $0x8] sm:$0x33] %v370
      %373 = vrot.lane.b32.xlu0 %v274, 16
      %v374 = vpop.permute.xlu0 %373
      %v375 = vrot.slane %v374, 6
      %vm376 = vcmask 130048
      %v377 = vsel %vm376, %v375, %v374
      %v379 = vmul.bf16 %v226, %v377
      %v381 = vcombine.low %v379, %v379
      %v383 = vunpack.c.l.s4 1983009808
      %v384 = vunpack.c.0.s8 %v383
      %v385 = vlaneseq
      %v386 = vshrl.u32 %v385, 7
      %v387 = vsub.s32 %v384, %v386
      %v388 = vrot.slane %v381, %v387
      %v390 = vunpack.c.l.s4 1983009808
      %v391 = vunpack.c.0.s8 %v390
      %v392 = vlaneseq
      %v393 = vshrl.u32 %v392, 7
      %v394 = vsub.s32 %v391, %v393
      %v395 = vrot.slane %v379, %v394
      %396 = vrot.lane.b32.xlu0 %v388, 112
      %v397 = vpop.permute.xlu0 %396
      %398 = vrot.lane.b32.xlu0 %v395, 112
      %v399 = vpop.permute.xlu0 %398
      %v400 = vrot.slane %v397, 4
      %v401 = vrot.slane %v399, 4
      %v402 = vsel %vm309, %v400, %v401
      %vm403 = vcmask 916480
      %v404 = vsel %vm403, %v397, %v402
      %406 = vst [vmem:[#allocation2 + $0x8] sm:$0xcc] %v404
      %v407 = vcombine.high %v226, %v226
      %v409 = vunpack.c.l.s4 1983009808
      %v410 = vunpack.c.0.s8 %v409
      %v411 = vlaneseq
      %v412 = vshrl.u32 %v411, 7
      %v413 = vsub.s32 %v410, %v412
      %v414 = vrot.slane %v407, %v413
      %415 = vrot.lane.b32.xlu0 %v302, 111
      %v416 = vpop.permute.xlu0 %415
      %417 = vrot.lane.b32.xlu0 %v414, 111
      %v418 = vpop.permute.xlu0 %417
      %v419 = vrot.slane %v416, 4
      %v420 = vrot.slane %v418, 4
      %v421 = vsel %vm309, %v419, %v420
      %vm422 = vcmask 908288
      %v423 = vsel %vm422, %v416, %v421
      %425 = vst [vmem:[#allocation2 + $0x10] sm:$0x33] %v423
      %426 = vrot.lane.b32.xlu0 %v338, 18
      %v427 = vpop.permute.xlu0 %426
      %v428 = vrot.slane %v427, 6
      %vm429 = vcmask 146432
      %v430 = vsel %vm429, %v428, %v427
      %v432 = vmul.bf16 %v226, %v430
      %v434 = vcombine.low %v432, %v432
      %v436 = vunpack.c.l.s4 1983009808
      %v437 = vunpack.c.0.s8 %v436
      %v438 = vlaneseq
      %v439 = vshrl.u32 %v438, 7
      %v440 = vsub.s32 %v437, %v439
      %v441 = vrot.slane %v434, %v440
      %v443 = vunpack.c.l.s4 1983009808
      %v444 = vunpack.c.0.s8 %v443
      %v445 = vlaneseq
      %v446 = vshrl.u32 %v445, 7
      %v447 = vsub.s32 %v444, %v446
      %v448 = vrot.slane %v432, %v447
      %449 = vrot.lane.b32.xlu0 %v441, 110
      %v450 = vpop.permute.xlu0 %449
      %451 = vrot.lane.b32.xlu0 %v448, 110
      %v452 = vpop.permute.xlu0 %451
      %v453 = vrot.slane %v450, 4
      %v454 = vrot.slane %v452, 4
      %v455 = vsel %vm309, %v453, %v454
      %vm456 = vcmask 900096
      %v457 = vsel %vm456, %v450, %v455
      %459 = vst [vmem:[#allocation2 + $0x10] sm:$0xcc] %v457
      %460 = vrot.lane.b32.xlu0 %v274, 32
      %v461 = vpop.permute.xlu0 %460
      %v462 = vrot.slane %v461, 6
      %vm463 = vcmask 261120
      %v464 = vsel %vm463, %v462, %v461
      %v466 = vmul.bf16 %v226, %v464
      %v468 = vcombine.high %v466, %v466
      %v470 = vunpack.c.l.s4 1983009808
      %v471 = vunpack.c.0.s8 %v470
      %v472 = vlaneseq
      %v473 = vshrl.u32 %v472, 7
      %v474 = vsub.s32 %v471, %v473
      %v475 = vrot.slane %v466, %v474
      %v477 = vunpack.c.l.s4 1983009808
      %v478 = vunpack.c.0.s8 %v477
      %v479 = vlaneseq
      %v480 = vshrl.u32 %v479, 7
      %v481 = vsub.s32 %v478, %v480
      %v482 = vrot.slane %v468, %v481
      %483 = vrot.lane.b32.xlu0 %v475, 96
      %v484 = vpop.permute.xlu0 %483
      %485 = vrot.lane.b32.xlu0 %v482, 96
      %v486 = vpop.permute.xlu0 %485
      %v487 = vrot.slane %v484, 4
      %v488 = vrot.slane %v486, 4
      %v489 = vsel %vm309, %v487, %v488
      %vm490 = vcmask 785408
      %v491 = vsel %vm490, %v484, %v489
      %493 = vst [vmem:[#allocation2 + $0x18] sm:$0x33] %v491
      %494 = vrot.lane.b32.xlu0 %v295, 95
      %v495 = vpop.permute.xlu0 %494
      %496 = vrot.lane.b32.xlu0 %v302, 95
      %v497 = vpop.permute.xlu0 %496
      %v498 = vrot.slane %v495, 4
      %v499 = vrot.slane %v497, 4
      %v500 = vsel %vm309, %v498, %v499
      %vm501 = vcmask 777216
      %v502 = vsel %vm501, %v495, %v500
      %504 = vst [vmem:[#allocation2 + $0x18] sm:$0xcc] %v502
      %505 = vrot.lane.b32.xlu0 %v338, 34
      %v506 = vpop.permute.xlu0 %505
      %v507 = vrot.slane %v506, 6
      %vm508 = vcmask 277504
      %v509 = vsel %vm508, %v507, %v506
      %v511 = vmul.bf16 %v226, %v509
      %v513 = vcombine.high %v511, %v511
      %v515 = vunpack.c.l.s4 1983009808
      %v516 = vunpack.c.0.s8 %v515
      %v517 = vlaneseq
      %v518 = vshrl.u32 %v517, 7
      %v519 = vsub.s32 %v516, %v518
      %v520 = vrot.slane %v511, %v519
      %v522 = vunpack.c.l.s4 1983009808
      %v523 = vunpack.c.0.s8 %v522
      %v524 = vlaneseq
      %v525 = vshrl.u32 %v524, 7
      %v526 = vsub.s32 %v523, %v525
      %v527 = vrot.slane %v513, %v526
      %528 = vrot.lane.b32.xlu0 %v520, 94
      %v529 = vpop.permute.xlu0 %528
      %530 = vrot.lane.b32.xlu0 %v527, 94
      %v531 = vpop.permute.xlu0 %530
      %v532 = vrot.slane %v529, 4
      %v533 = vrot.slane %v531, 4
      %v534 = vsel %vm309, %v532, %v533
      %vm535 = vcmask 769024
      %v536 = vsel %vm535, %v529, %v534
      %538 = vst [vmem:[#allocation2 + $0x20] sm:$0x33] %v536
      %v539 = vld [vmem:[%s1] sm:$0xf]
      %v540 = vld [vmem:[#allocation2] sm:$0xff]
      %v541 = vld [vmem:[#allocation2 + $0x8] sm:$0xff]
      %v542 = vld [vmem:[#allocation2 + $0x10] sm:$0xff]
      %v543 = vld [vmem:[#allocation2 + $0x18] sm:$0xff]
      %v544 = vld [vmem:[#allocation2 + $0x20] sm:$0x33]
      %v550 = vunpack.c.l.b16 %v540
      %v551 = vunpack.c.h.b16 %v540
      %v552 = vunpack.c.l.b16 %v541
      %v553 = vunpack.c.h.b16 %v541
      %v554 = vunpack.c.l.b16 %v542
      %v555 = vunpack.c.h.b16 %v542
      %v556 = vunpack.c.l.b16 %v543
      %v557 = vunpack.c.h.b16 %v543
      %v558 = vunpack.c.l.b16 %v544
      %v559 = vunpack.c.h.b16 %v544
      %v560 = vpack.c.b16 %v552, %v550
      %v561 = vpack.c.b16 %v553, %v551
      %v562 = vpack.c.b16 %v556, %v554
      %v563 = vpack.c.b16 %v557, %v555
      %v564 = vpack.c.b16 %v558, %v558
      %v565 = vpack.c.b16 %v559, %v559
      %vm570 = vcmask 293888
      %v572 = vsel %vm570, %v539, 0
      %vm574 = vcmask 1041408
      %v576 = vsel %vm574, %v564, 0
      %v579 = vsel %vm574, %v565, 0
      %581 = vmatprep.subr.bf16.mxu0 %v561
      %582 = vmatpush1.bf16.msra.mxu0 %v560
      %583 = vmatprep.subr.bf16.mxu0 %v563
      %584 = vmatpush1.bf16.msra.mxu0 %v562
      %585 = vmatprep.subr.bf16.mxu0 %v579
      %586 = vmatpush1.bf16.msra.mxu0 %v576
      %587 = vmatprep.subr.bf16.mxu0 0
      %588 = vmatpush1.bf16.msra.mxu0 0
      %589 = vmatprep.subr.bf16.mxu0 0
      %590 = vmatpush1.bf16.msra.mxu0 0
      %591 = vmatprep.subr.bf16.mxu0 0
      %592 = vmatpush1.bf16.msra.mxu0 0
      %593 = vmatprep.subr.bf16.mxu0 0
      %594 = vmatpush1.bf16.msra.mxu0 0
      %595 = vmatprep.subr.bf16.mxu0 0
      %596 = vmatpush1.bf16.msra.mxu0 0
      %597 = vmatprep.subr.bf16.mxu0 0
      %598 = vmatpush1.bf16.msra.mxu0 0
      %599 = vmatprep.subr.bf16.mxu0 0
      %600 = vmatpush1.bf16.msra.mxu0 0
      %601 = vmatprep.subr.bf16.mxu0 0
      %602 = vmatpush1.bf16.msra.mxu0 0
      %603 = vmatprep.subr.bf16.mxu0 0
      %604 = vmatpush1.bf16.msra.mxu0 0
      %605 = vmatprep.subr.bf16.mxu0 0
      %606 = vmatpush1.bf16.msra.mxu0 0
      %607 = vmatprep.subr.bf16.mxu0 0
      %608 = vmatpush1.bf16.msra.mxu0 0
      %609 = vmatprep.subr.bf16.mxu0 0
      %610 = vmatpush1.bf16.msra.mxu0 0
      %611 = vmatprep.subr.bf16.mxu0 0
      %612 = vmatpush1.bf16.msra.mxu0 0
      %613 = vmatprep.mubr.bf16.mxu0 0
      %614 = vmatmul.mubr.bf16.gmra.mrb[0].mxu0 %v572
      %v615 = vpop.f32.mrb[0].mxu0
      %v616 = vadd.f32 0.0, %v615
      %v617 = vpop.f32.mrb[0].mxu0
      %v618 = vadd.f32 0.0, %v617
      %v619 = vpop.f32.mrb[0].mxu0
      %v620 = vpop.f32.mrb[0].mxu0
      %621 = vdwg.mxu0
      %v622 = vld [vmem:[%s3] sm:$0xff]
      %624 = vset.pattern.permute.xlu0 0
      %625 = vperm.xlu0 %624, %v622
      %v626 = vpop.permute.xlu0 %625
      %v628 = vmul.f32 %v616, %v626
      %v629 = vmul.f32 %v618, %v626
      %v630 = vld [vmem:[%s4] sm:$0xff]
      %632 = vset.pattern.permute.xlu0 0
      %633 = vperm.xlu0 %632, %v630
      %v634 = vpop.permute.xlu0 %633
      %v636 = vadd.f32 %v628, %v634
      %v637 = vadd.f32 %v629, %v634
      %v638 = vmax.f32 %v636, 0.0
      %v639 = vmax.f32 %v637, 0.0
      %640 = vst [vmem:[%s224] sm:$0xff] %v638
      %641 = vst [vmem:[%s224 + $0x8] sm:$0xff] %v639
      %p642 = scmp.lt.s32.totalorder %s16, 1
      %s643 = scalar_select %p642, %s16, 1
      %s644 = smul.addr %s643, 2
      %s645 = smul.addr %s644, 8
      %s646 = scalar_lea.vmem %s5, %s645
      // Predicated region
      $region41: #{block_forward.3} parent=39 // pred_check
        %p647 = pneg %p144
      $region42: #{block_forward.3} parent=39 // pred_check_branch
        %649 = sbr.rel (%p647) target = $region44
      $region43: #{block_forward.3} parent=39 // pred_region
        _
      $region44: #{block_forward.3} parent=39 // pred_fallthru
        _
    $region40: #{block_forward.3} parent=5 // pred_fallthru
      _
    %p650 = scmp.le.s32.totalorder 2, %s11
    // Predicated region
    $region45: #{block_forward.3} parent=5 // pred_check
      %p651 = pneg %p650
    $region46: #{block_forward.3} parent=5 // pred_check_branch
      %653 = sbr.rel (%p651) target = $region48
    $region47: #{block_forward.3} parent=5 // pred_region
      %s654 = ssub.s32 %s11, 2
      // Predicated region
      $region49: #{block_forward.3} parent=47 // pred_check
        %p655 = pneg %p150
      $region50: #{block_forward.3} parent=47 // pred_check_branch
        %657 = sbr.rel (%p655) target = $region52
      $region51: #{block_forward.3} parent=47 // pred_region
        %p658 = scmp.lt.s32.totalorder %s17, 1
        %s659 = scalar_select %p658, %s17, 1
        %s660 = smul.addr %s659, 2
        %s661 = smul.addr %s660, 8
        %s662 = scalar_lea.vmem %s5, %s661
      $region52: #{block_forward.3} parent=47 // pred_fallthru
        _
    $region48: #{block_forward.3} parent=5 // pred_fallthru
      _
  $region6: #{block_forward.3} parent=0 // loop_footer
    %s15 = sadd.s32 1, %s11
  $region7: #{block_forward.3} parent=0 // loop_footer_branch
    %10 = sbr.rel target = $region3
  $region8: #{block_forward.3} parent=0 // loop_exit
    _

// kernel: block_forward.2
$region0: #{block_forward.2}
  #allocation0 [shape = 'u32[]', space=smem, size = 0x4, offset = 0x4, fixed_abs, tag = 'smem constant byte address 0x4 - core index']
  #allocation1 [shape = 'u32[144,128]{1,0:T(1,128)}', space=vmem, size = 0x12000, scoped, tag = 'internal scratch']
  #allocation2 [shape = 'bf16[36,256]{1,0:T(8,128)(2,1)}', space=vmem, size = 0x5000, scoped, tag = 'scratch operand']
  %s0 = inlined_call_operand.vmem [shape: bf16[2,4,290], index: 0, kind: input, shape index: {}]
  %s1 = inlined_call_operand.vmem [shape: bf16[8,36], index: 1, kind: input, shape index: {}]
  %s2 = inlined_call_operand.vmem [shape: bf16[2,256], index: 2, kind: input, shape index: {}]
  %s3 = inlined_call_operand.vmem [shape: f32[2,8,1], index: 3, kind: output, shape index: {0}]
  %s4 = inlined_call_operand.vmem [shape: f32[2,8,1], index: 4, kind: output, shape index: {1}]
  %5 = xla_tuple %s3, %s4
  %s6 = sld [smem:[#allocation0]]
  $region53: #{block_forward.2} parent=0
    _
  %s8 = ssub.s32 1, %s6
  %s9 = scalar_select 0, %s8, %s6
  loop: start=0, step=1, limit=4
  $region2: #{block_forward.2} parent=0 // loop_pre_header
    _
  $region3: #{block_forward.2} parent=0 // loop_header
    %s11 = sphi 0, %s15
    %p12 = scmp.ge.s32.totalorder %s11, 4
    %s21 = sphi 0, %s23
    %s24 = sphi 0, %s21
    %s25 = sphi 0, %s24
    %s41 = sphi 0, %s25
    %s45 = sphi 0, %s45
    %s47 = sphi 0, %s45
    %s48 = sphi 0, %s47
    %s62 = sphi 0, %s48
    %s66 = sphi 0, %s66
    %s68 = sphi 0, %s66
    %s69 = sphi 0, %s68
    %s83 = sphi 0, %s69
    %s89 = sphi 0, %s91
    %s92 = sphi 0, %s89
    %s93 = sphi 0, %s92
    %s109 = sphi 0, %s93
    %s115 = sphi 0, %s117
    %s118 = sphi 0, %s115
    %s119 = sphi 0, %s118
    %s135 = sphi 0, %s119
  $region4: #{block_forward.2} parent=0 // loop_header_branch
    %14 = sbr.rel (%p12) target = $region8
  $region5: #{block_forward.2} parent=0 // loop_body
    %s16 = ssub.s32 %s11, 1
    %s17 = ssub.s32 %s11, 2
    %s18 = sadd.s32 %s11, 1
    %s19 = ssub.s32 %s11, %s18
    %p20 = scmp.eq.s32.totalorder %s19, 0
    %s22 = sadd.s32 %s21, 1
    %s23 = scalar_select %p20, %s21, %s22
    %p26 = pneg %p20
    %p27 = scmp.eq.s32.totalorder %s11, 1
    %p28 = por %p26, %p27
    %p29 = scmp.ne.s32.totalorder %s21, %s24
    %p30 = scmp.eq.s32.totalorder %s11, 0
    %p31 = por %p29, %p30
    %p32 = scmp.ne.s32.totalorder %s21, %s24
    %p33 = scmp.eq.s32.totalorder %s16, 1
    %p34 = por %p32, %p33
    %p35 = scmp.ne.s32.totalorder %s24, %s25
    %p36 = scmp.eq.s32.totalorder %s16, 0
    %p37 = por %p35, %p36
    %p38 = scmp.ne.s32.totalorder %s24, %s25
    %p39 = scmp.eq.s32.totalorder %s17, 1
    %p40 = por %p38, %p39
    %p42 = scmp.ne.s32.totalorder %s25, %s41
    %p43 = scmp.eq.s32.totalorder %s17, 0
    %p44 = por %p42, %p43
    %s46 = sadd.s32 %s45, 1
    %p49 = scmp.eq.s32.totalorder %s11, 1
    %p50 = scmp.ne.s32.totalorder %s45, %s47
    %p51 = scmp.eq.s32.totalorder %s11, 0
    %p52 = por %p50, %p51
    %p53 = scmp.ne.s32.totalorder %s45, %s47
    %p54 = scmp.eq.s32.totalorder %s16, 1
    %p55 = por %p53, %p54
    %p56 = scmp.ne.s32.totalorder %s47, %s48
    %p57 = scmp.eq.s32.totalorder %s16, 0
    %p58 = por %p56, %p57
    %p59 = scmp.ne.s32.totalorder %s47, %s48
    %p60 = scmp.eq.s32.totalorder %s17, 1
    %p61 = por %p59, %p60
    %p63 = scmp.ne.s32.totalorder %s48, %s62
    %p64 = scmp.eq.s32.totalorder %s17, 0
    %p65 = por %p63, %p64
    %s67 = sadd.s32 %s66, 1
    %p70 = scmp.eq.s32.totalorder %s11, 1
    %p71 = scmp.ne.s32.totalorder %s66, %s68
    %p72 = scmp.eq.s32.totalorder %s11, 0
    %p73 = por %p71, %p72
    %p74 = scmp.ne.s32.totalorder %s66, %s68
    %p75 = scmp.eq.s32.totalorder %s16, 1
    %p76 = por %p74, %p75
    %p77 = scmp.ne.s32.totalorder %s68, %s69
    %p78 = scmp.eq.s32.totalorder %s16, 0
    %p79 = por %p77, %p78
    %p80 = scmp.ne.s32.totalorder %s68, %s69
    %p81 = scmp.eq.s32.totalorder %s17, 1
    %p82 = por %p80, %p81
    %p84 = scmp.ne.s32.totalorder %s69, %s83
    %p85 = scmp.eq.s32.totalorder %s17, 0
    %p86 = por %p84, %p85
    %s87 = ssub.s32 %s11, %s18
    %p88 = scmp.eq.s32.totalorder %s87, 0
    %s90 = sadd.s32 %s89, 1
    %s91 = scalar_select %p88, %s89, %s90
    %p94 = pneg %p88
    %p95 = scmp.eq.s32.totalorder %s11, 1
    %p96 = por %p94, %p95
    %p97 = scmp.ne.s32.totalorder %s89, %s92
    %p98 = scmp.eq.s32.totalorder %s11, 0
    %p99 = por %p97, %p98
    %p100 = scmp.ne.s32.totalorder %s89, %s92
    %p101 = scmp.eq.s32.totalorder %s16, 1
    %p102 = por %p100, %p101
    %p103 = scmp.ne.s32.totalorder %s92, %s93
    %p104 = scmp.eq.s32.totalorder %s16, 0
    %p105 = por %p103, %p104
    %p106 = scmp.ne.s32.totalorder %s92, %s93
    %p107 = scmp.eq.s32.totalorder %s17, 1
    %p108 = por %p106, %p107
    %p110 = scmp.ne.s32.totalorder %s93, %s109
    %p111 = scmp.eq.s32.totalorder %s17, 0
    %p112 = por %p110, %p111
    %s113 = ssub.s32 %s11, %s18
    %p114 = scmp.eq.s32.totalorder %s113, 0
    %s116 = sadd.s32 %s115, 1
    %s117 = scalar_select %p114, %s115, %s116
    %p120 = pneg %p114
    %p121 = scmp.eq.s32.totalorder %s11, 1
    %p122 = por %p120, %p121
    %p123 = scmp.ne.s32.totalorder %s115, %s118
    %p124 = scmp.eq.s32.totalorder %s11, 0
    %p125 = por %p123, %p124
    %p126 = scmp.ne.s32.totalorder %s115, %s118
    %p127 = scmp.eq.s32.totalorder %s16, 1
    %p128 = por %p126, %p127
    %p129 = scmp.ne.s32.totalorder %s118, %s119
    %p130 = scmp.eq.s32.totalorder %s16, 0
    %p131 = por %p129, %p130
    %p132 = scmp.ne.s32.totalorder %s118, %s119
    %p133 = scmp.eq.s32.totalorder %s17, 1
    %p134 = por %p132, %p133
    %p136 = scmp.ne.s32.totalorder %s119, %s135
    %p137 = scmp.eq.s32.totalorder %s17, 0
    %p138 = por %p136, %p137
    %p139 = scmp.le.s32.totalorder 1, %s11
    %p140 = scmp.lt.s32.totalorder %s11, 3
    %p141 = pnand %p139, %p140
    %p142 = pneg %p141
    // Predicated region
    $region9: #{block_forward.2} parent=5 // pred_check
      _
    $region10: #{block_forward.2} parent=5 // pred_check_branch
      %144 = sbr.rel (%p141) target = $region12
    $region11: #{block_forward.2} parent=5 // pred_region
      %s145 = ssub.s32 %s11, 1
      // Predicated region
      $region13: #{block_forward.2} parent=11 // pred_check
        %p146 = pneg %p58
      $region14: #{block_forward.2} parent=11 // pred_check_branch
        %148 = sbr.rel (%p146) target = $region16
      $region15: #{block_forward.2} parent=11 // pred_region
        _
      $region16: #{block_forward.2} parent=11 // pred_fallthru
        _
      // Predicated region
      $region17: #{block_forward.2} parent=11 // pred_check
        %p149 = pneg %p79
      $region18: #{block_forward.2} parent=11 // pred_check_branch
        %151 = sbr.rel (%p149) target = $region20
      $region19: #{block_forward.2} parent=11 // pred_region
        _
      $region20: #{block_forward.2} parent=11 // pred_fallthru
        _
    $region12: #{block_forward.2} parent=5 // pred_fallthru
      _
    %p152 = scmp.lt.s32.totalorder %s11, 2
    // Predicated region
    $region21: #{block_forward.2} parent=5 // pred_check
      %p153 = pneg %p152
    $region22: #{block_forward.2} parent=5 // pred_check_branch
      %155 = sbr.rel (%p153) target = $region24
    $region23: #{block_forward.2} parent=5 // pred_region
      // Predicated region
      $region25: #{block_forward.2} parent=23 // pred_check
        %p156 = pneg %p31
      $region26: #{block_forward.2} parent=23 // pred_check_branch
        %158 = sbr.rel (%p156) target = $region28
      $region27: #{block_forward.2} parent=23 // pred_region
        %p159 = scmp.lt.s32.totalorder %s11, 1
        %s160 = scalar_select %p159, %s11, 1
        %s161 = smul.addr %s160, 3
        %s162 = smul.addr %s161, 2
        %s163 = scalar_lea.vmem %s0, %s162
      $region28: #{block_forward.2} parent=23 // pred_fallthru
        _
    $region24: #{block_forward.2} parent=5 // pred_fallthru
      _
    %p164 = scmp.le.s32.totalorder 1, %s11
    %p165 = scmp.lt.s32.totalorder %s11, 3
    %p166 = pnand %p164, %p165
    %p167 = pneg %p166
    // Predicated region
    $region29: #{block_forward.2} parent=5 // pred_check
      _
    $region30: #{block_forward.2} parent=5 // pred_check_branch
      %169 = sbr.rel (%p166) target = $region32
    $region31: #{block_forward.2} parent=5 // pred_region
      %s170 = ssub.s32 %s11, 1
      %p171 = scmp.lt.s32.totalorder %s16, 1
      %s172 = scalar_select %p171, %s16, 1
      %s173 = smul.addr %s172, 3
      %s174 = smul.addr %s173, 2
      %s175 = scalar_lea.vmem %s0, %s174
      %p176 = pneg %p37
      %p177 = pneg %p34
      %p178 = pneg %p58
      %p179 = pneg %p55
      %p180 = pneg %p79
      %p181 = pneg %p76
      %p182 = pneg %p105
      %p183 = pneg %p102
      %p184 = scmp.lt.s32.totalorder %s16, 1
      %s185 = scalar_select %p184, %s16, 1
      %s186 = smul.addr %s185, 8
      %s187 = scalar_lea.vmem %s3, %s186
      %p188 = pneg %p131
      %p189 = pneg %p128
      %p190 = scmp.lt.s32.totalorder %s16, 1
      %s191 = scalar_select %p190, %s16, 1
      %s192 = smul.addr %s191, 8
      %s193 = scalar_lea.vmem %s4, %s192
      %p194 = scmp.lt.s32.totalorder %s16, 1
      %s195 = scalar_select %p194, %s16, 1
      %s196 = smul.addr %s195, 3
      %s197 = smul.addr %s196, 2
      %s198 = scalar_lea.vmem %s0, %s197
      %p199 = scmp.lt.s32.totalorder %s16, 1
      %s200 = scalar_select %p199, %s16, 1
      %s201 = smul.addr %s200, 8
      %s202 = scalar_lea.vmem %s3, %s201
      %p203 = scmp.lt.s32.totalorder %s16, 1
      %s204 = scalar_select %p203, %s16, 1
      %s205 = smul.addr %s204, 8
      %s206 = scalar_lea.vmem %s4, %s205
      %v208 = vld [vmem:[%s198] sm:$0x3f]
      %v209 = vld [vmem:[%s2] sm:$0x3]
      %v212 = vunpack.c.l.s4 1966171168
      %v213 = vunpack.c.0.s8 %v212
      %v214 = vlaneseq
      %v215 = vshrl.u32 %v214, 7
      %v216 = vsub.s32 %v213, %v215
      %v217 = vrot.slane %v209, %v216
      %v218 = vcombine.high %v217, %v217
      %v220 = vunpack.c.l.s4 1966171168
      %v221 = vunpack.c.0.s8 %v220
      %v222 = vlaneseq
      %v223 = vshrl.u32 %v222, 7
      %v224 = vsub.s32 %v221, %v223
      %v225 = vrot.slane %v217, %v224
      %v227 = vunpack.c.l.s4 1966171168
      %v228 = vunpack.c.0.s8 %v227
      %v229 = vlaneseq
      %v230 = vshrl.u32 %v229, 7
      %v231 = vsub.s32 %v228, %v230
      %v232 = vrot.slane %v218, %v231
      %v234 = vpack.i.b16 %v225, %v225
      %v236 = vlaneseq
      %v237 = vshrl.u32 %v236, 7
      %v238 = vsub.s32 0, %v237
      %v239 = vrot.slane %v234, %v238
      %v241 = vpack.i.b16 %v232, %v232
      %v243 = vlaneseq
      %v244 = vshrl.u32 %v243, 7
      %v245 = vsub.s32 0, %v244
      %v246 = vrot.slane %v241, %v245
      %v249 = vcombine.low %v239, %v246
      %v251 = vunpack.c.l.s4 1983009808
      %v252 = vunpack.c.0.s8 %v251
      %v253 = vlaneseq
      %v254 = vshrl.u32 %v253, 7
      %v255 = vsub.s32 %v252, %v254
      %v256 = vrot.slane %v249, %v255
      %v258 = vmul.bf16 %v208, %v256
      %v261 = vunpack.c.l.s4 1983009808
      %v262 = vunpack.c.0.s8 %v261
      %v263 = vlaneseq
      %v264 = vshrl.u32 %v263, 7
      %v265 = vsub.s32 %v262, %v264
      %v266 = vrot.slane %v258, %v265
      %268 = vst [vmem:[#allocation2] sm:$0x33] %v266
      %v270 = vcombine.low %v208, %v208
      %v272 = vunpack.c.l.s4 1983009808
      %v273 = vunpack.c.0.s8 %v272
      %v274 = vlaneseq
      %v275 = vshrl.u32 %v274, 7
      %v276 = vsub.s32 %v273, %v275
      %v277 = vrot.slane %v270, %v276
      %v279 = vunpack.c.l.s4 1983009808
      %v280 = vunpack.c.0.s8 %v279
      %v281 = vlaneseq
      %v282 = vshrl.u32 %v281, 7
      %v283 = vsub.s32 %v280, %v282
      %v284 = vrot.slane %v208, %v283
      %285 = vrot.lane.b32.xlu0 %v277, 127
      %v286 = vpop.permute.xlu0 %285
      %287 = vrot.lane.b32.xlu0 %v284, 127
      %v288 = vpop.permute.xlu0 %287
      %v289 = vrot.slane %v286, 4
      %v290 = vrot.slane %v288, 4
      %vm291 = vcmask 1043456
      %v292 = vsel %vm291, %v289, %v290
      %vm293 = vcmask 1039360
      %v294 = vsel %vm293, %v286, %v292
      %296 = vst [vmem:[#allocation2] sm:$0xcc] %v294
      %v297 = vshrl.u32 %v225, 16
      %v298 = vpack.i.b16 %v297, %v297
      %v300 = vlaneseq
      %v301 = vshrl.u32 %v300, 7
      %v302 = vsub.s32 0, %v301
      %v303 = vrot.slane %v298, %v302
      %v304 = vshrl.u32 %v232, 16
      %v305 = vpack.i.b16 %v304, %v304
      %v307 = vlaneseq
      %v308 = vshrl.u32 %v307, 7
      %v309 = vsub.s32 0, %v308
      %v310 = vrot.slane %v305, %v309
      %v313 = vcombine.low %v303, %v310
      %v315 = vunpack.c.l.s4 1983009808
      %v316 = vunpack.c.0.s8 %v315
      %v317 = vlaneseq
      %v318 = vshrl.u32 %v317, 7
      %v319 = vsub.s32 %v316, %v318
      %v320 = vrot.slane %v313, %v319
      %321 = vrot.lane.b32.xlu0 %v320, 2
      %v322 = vpop.permute.xlu0 %321
      %v323 = vrot.slane %v322, 6
      %vm324 = vcmask 15360
      %v325 = vsel %vm324, %v323, %v322
      %v327 = vmul.bf16 %v208, %v325
      %v329 = vcombine.high %v327, %v327
      %v331 = vunpack.c.l.s4 1983009808
      %v332 = vunpack.c.0.s8 %v331
      %v333 = vlaneseq
      %v334 = vshrl.u32 %v333, 7
      %v335 = vsub.s32 %v332, %v334
      %v336 = vrot.slane %v327, %v335
      %v338 = vunpack.c.l.s4 1983009808
      %v339 = vunpack.c.0.s8 %v338
      %v340 = vlaneseq
      %v341 = vshrl.u32 %v340, 7
      %v342 = vsub.s32 %v339, %v341
      %v343 = vrot.slane %v329, %v342
      %344 = vrot.lane.b32.xlu0 %v336, 126
      %v345 = vpop.permute.xlu0 %344
      %346 = vrot.lane.b32.xlu0 %v343, 126
      %v347 = vpop.permute.xlu0 %346
      %v348 = vrot.slane %v345, 4
      %v349 = vrot.slane %v347, 4
      %v350 = vsel %vm291, %v348, %v349
      %vm351 = vcmask 1031168
      %v352 = vsel %vm351, %v345, %v350
      %354 = vst [vmem:[#allocation2 + $0x8] sm:$0x33] %v352
      %355 = vrot.lane.b32.xlu0 %v256, 16
      %v356 = vpop.permute.xlu0 %355
      %v357 = vrot.slane %v356, 6
      %vm358 = vcmask 130048
      %v359 = vsel %vm358, %v357, %v356
      %v361 = vmul.bf16 %v208, %v359
      %v363 = vcombine.low %v361, %v361
      %v365 = vunpack.c.l.s4 1983009808
      %v366 = vunpack.c.0.s8 %v365
      %v367 = vlaneseq
      %v368 = vshrl.u32 %v367, 7
      %v369 = vsub.s32 %v366, %v368
      %v370 = vrot.slane %v363, %v369
      %v372 = vunpack.c.l.s4 1983009808
      %v373 = vunpack.c.0.s8 %v372
      %v374 = vlaneseq
      %v375 = vshrl.u32 %v374, 7
      %v376 = vsub.s32 %v373, %v375
      %v377 = vrot.slane %v361, %v376
      %378 = vrot.lane.b32.xlu0 %v370, 112
      %v379 = vpop.permute.xlu0 %378
      %380 = vrot.lane.b32.xlu0 %v377, 112
      %v381 = vpop.permute.xlu0 %380
      %v382 = vrot.slane %v379, 4
      %v383 = vrot.slane %v381, 4
      %v384 = vsel %vm291, %v382, %v383
      %vm385 = vcmask 916480
      %v386 = vsel %vm385, %v379, %v384
      %388 = vst [vmem:[#allocation2 + $0x8] sm:$0xcc] %v386
      %v389 = vcombine.high %v208, %v208
      %v391 = vunpack.c.l.s4 1983009808
      %v392 = vunpack.c.0.s8 %v391
      %v393 = vlaneseq
      %v394 = vshrl.u32 %v393, 7
      %v395 = vsub.s32 %v392, %v394
      %v396 = vrot.slane %v389, %v395
      %397 = vrot.lane.b32.xlu0 %v284, 111
      %v398 = vpop.permute.xlu0 %397
      %399 = vrot.lane.b32.xlu0 %v396, 111
      %v400 = vpop.permute.xlu0 %399
      %v401 = vrot.slane %v398, 4
      %v402 = vrot.slane %v400, 4
      %v403 = vsel %vm291, %v401, %v402
      %vm404 = vcmask 908288
      %v405 = vsel %vm404, %v398, %v403
      %407 = vst [vmem:[#allocation2 + $0x10] sm:$0x33] %v405
      %408 = vrot.lane.b32.xlu0 %v320, 18
      %v409 = vpop.permute.xlu0 %408
      %v410 = vrot.slane %v409, 6
      %vm411 = vcmask 146432
      %v412 = vsel %vm411, %v410, %v409
      %v414 = vmul.bf16 %v208, %v412
      %v416 = vcombine.low %v414, %v414
      %v418 = vunpack.c.l.s4 1983009808
      %v419 = vunpack.c.0.s8 %v418
      %v420 = vlaneseq
      %v421 = vshrl.u32 %v420, 7
      %v422 = vsub.s32 %v419, %v421
      %v423 = vrot.slane %v416, %v422
      %v425 = vunpack.c.l.s4 1983009808
      %v426 = vunpack.c.0.s8 %v425
      %v427 = vlaneseq
      %v428 = vshrl.u32 %v427, 7
      %v429 = vsub.s32 %v426, %v428
      %v430 = vrot.slane %v414, %v429
      %431 = vrot.lane.b32.xlu0 %v423, 110
      %v432 = vpop.permute.xlu0 %431
      %433 = vrot.lane.b32.xlu0 %v430, 110
      %v434 = vpop.permute.xlu0 %433
      %v435 = vrot.slane %v432, 4
      %v436 = vrot.slane %v434, 4
      %v437 = vsel %vm291, %v435, %v436
      %vm438 = vcmask 900096
      %v439 = vsel %vm438, %v432, %v437
      %441 = vst [vmem:[#allocation2 + $0x10] sm:$0xcc] %v439
      %442 = vrot.lane.b32.xlu0 %v256, 32
      %v443 = vpop.permute.xlu0 %442
      %v444 = vrot.slane %v443, 6
      %vm445 = vcmask 261120
      %v446 = vsel %vm445, %v444, %v443
      %v448 = vmul.bf16 %v208, %v446
      %v450 = vcombine.high %v448, %v448
      %v452 = vunpack.c.l.s4 1983009808
      %v453 = vunpack.c.0.s8 %v452
      %v454 = vlaneseq
      %v455 = vshrl.u32 %v454, 7
      %v456 = vsub.s32 %v453, %v455
      %v457 = vrot.slane %v448, %v456
      %v459 = vunpack.c.l.s4 1983009808
      %v460 = vunpack.c.0.s8 %v459
      %v461 = vlaneseq
      %v462 = vshrl.u32 %v461, 7
      %v463 = vsub.s32 %v460, %v462
      %v464 = vrot.slane %v450, %v463
      %465 = vrot.lane.b32.xlu0 %v457, 96
      %v466 = vpop.permute.xlu0 %465
      %467 = vrot.lane.b32.xlu0 %v464, 96
      %v468 = vpop.permute.xlu0 %467
      %v469 = vrot.slane %v466, 4
      %v470 = vrot.slane %v468, 4
      %v471 = vsel %vm291, %v469, %v470
      %vm472 = vcmask 785408
      %v473 = vsel %vm472, %v466, %v471
      %475 = vst [vmem:[#allocation2 + $0x18] sm:$0x33] %v473
      %476 = vrot.lane.b32.xlu0 %v277, 95
      %v477 = vpop.permute.xlu0 %476
      %478 = vrot.lane.b32.xlu0 %v284, 95
      %v479 = vpop.permute.xlu0 %478
      %v480 = vrot.slane %v477, 4
      %v481 = vrot.slane %v479, 4
      %v482 = vsel %vm291, %v480, %v481
      %vm483 = vcmask 777216
      %v484 = vsel %vm483, %v477, %v482
      %486 = vst [vmem:[#allocation2 + $0x18] sm:$0xcc] %v484
      %487 = vrot.lane.b32.xlu0 %v320, 34
      %v488 = vpop.permute.xlu0 %487
      %v489 = vrot.slane %v488, 6
      %vm490 = vcmask 277504
      %v491 = vsel %vm490, %v489, %v488
      %v493 = vmul.bf16 %v208, %v491
      %v495 = vcombine.high %v493, %v493
      %v497 = vunpack.c.l.s4 1983009808
      %v498 = vunpack.c.0.s8 %v497
      %v499 = vlaneseq
      %v500 = vshrl.u32 %v499, 7
      %v501 = vsub.s32 %v498, %v500
      %v502 = vrot.slane %v493, %v501
      %v504 = vunpack.c.l.s4 1983009808
      %v505 = vunpack.c.0.s8 %v504
      %v506 = vlaneseq
      %v507 = vshrl.u32 %v506, 7
      %v508 = vsub.s32 %v505, %v507
      %v509 = vrot.slane %v495, %v508
      %510 = vrot.lane.b32.xlu0 %v502, 94
      %v511 = vpop.permute.xlu0 %510
      %512 = vrot.lane.b32.xlu0 %v509, 94
      %v513 = vpop.permute.xlu0 %512
      %v514 = vrot.slane %v511, 4
      %v515 = vrot.slane %v513, 4
      %v516 = vsel %vm291, %v514, %v515
      %vm517 = vcmask 769024
      %v518 = vsel %vm517, %v511, %v516
      %520 = vst [vmem:[#allocation2 + $0x20] sm:$0x33] %v518
      %v521 = vld [vmem:[%s1] sm:$0xf]
      %v522 = vld [vmem:[#allocation2] sm:$0xff]
      %v523 = vld [vmem:[#allocation2 + $0x8] sm:$0xff]
      %v524 = vld [vmem:[#allocation2 + $0x10] sm:$0xff]
      %v525 = vld [vmem:[#allocation2 + $0x18] sm:$0xff]
      %v526 = vld [vmem:[#allocation2 + $0x20] sm:$0x33]
      %v532 = vunpack.c.l.b16 %v522
      %v533 = vunpack.c.h.b16 %v522
      %v534 = vunpack.c.l.b16 %v523
      %v535 = vunpack.c.h.b16 %v523
      %v536 = vunpack.c.l.b16 %v524
      %v537 = vunpack.c.h.b16 %v524
      %v538 = vunpack.c.l.b16 %v525
      %v539 = vunpack.c.h.b16 %v525
      %v540 = vunpack.c.l.b16 %v526
      %v541 = vunpack.c.h.b16 %v526
      %v542 = vpack.c.b16 %v534, %v532
      %v543 = vpack.c.b16 %v535, %v533
      %v544 = vpack.c.b16 %v538, %v536
      %v545 = vpack.c.b16 %v539, %v537
      %v546 = vpack.c.b16 %v540, %v540
      %v547 = vpack.c.b16 %v541, %v541
      %vm552 = vcmask 293888
      %v554 = vsel %vm552, %v521, 0
      %vm556 = vcmask 1041408
      %v558 = vsel %vm556, %v546, 0
      %v561 = vsel %vm556, %v547, 0
      %563 = vmatprep.subr.bf16.mxu0 %v543
      %564 = vmatpush1.bf16.msra.mxu0 %v542
      %565 = vmatprep.subr.bf16.mxu0 %v545
      %566 = vmatpush1.bf16.msra.mxu0 %v544
      %567 = vmatprep.subr.bf16.mxu0 %v561
      %568 = vmatpush1.bf16.msra.mxu0 %v558
      %569 = vmatprep.subr.bf16.mxu0 0
      %570 = vmatpush1.bf16.msra.mxu0 0
      %571 = vmatprep.subr.bf16.mxu0 0
      %572 = vmatpush1.bf16.msra.mxu0 0
      %573 = vmatprep.subr.bf16.mxu0 0
      %574 = vmatpush1.bf16.msra.mxu0 0
      %575 = vmatprep.subr.bf16.mxu0 0
      %576 = vmatpush1.bf16.msra.mxu0 0
      %577 = vmatprep.subr.bf16.mxu0 0
      %578 = vmatpush1.bf16.msra.mxu0 0
      %579 = vmatprep.subr.bf16.mxu0 0
      %580 = vmatpush1.bf16.msra.mxu0 0
      %581 = vmatprep.subr.bf16.mxu0 0
      %582 = vmatpush1.bf16.msra.mxu0 0
      %583 = vmatprep.subr.bf16.mxu0 0
      %584 = vmatpush1.bf16.msra.mxu0 0
      %585 = vmatprep.subr.bf16.mxu0 0
      %586 = vmatpush1.bf16.msra.mxu0 0
      %587 = vmatprep.subr.bf16.mxu0 0
      %588 = vmatpush1.bf16.msra.mxu0 0
      %589 = vmatprep.subr.bf16.mxu0 0
      %590 = vmatpush1.bf16.msra.mxu0 0
      %591 = vmatprep.subr.bf16.mxu0 0
      %592 = vmatpush1.bf16.msra.mxu0 0
      %593 = vmatprep.subr.bf16.mxu0 0
      %594 = vmatpush1.bf16.msra.mxu0 0
      %595 = vmatprep.mubr.bf16.mxu0 0
      %596 = vmatmul.mubr.bf16.gmra.mrb[0].mxu0 %v554
      %v597 = vpop.f32.mrb[0].mxu0
      %v598 = vadd.f32 0.0, %v597
      %v599 = vpop.f32.mrb[0].mxu0
      %v600 = vadd.f32 0.0, %v599
      %v601 = vpop.f32.mrb[0].mxu0
      %v602 = vpop.f32.mrb[0].mxu0
      %603 = vdwg.mxu0
      %v604 = vadd.f32 %v598, %v600
      %605 = vadd.xlane.f32.xlu0 %v604
      %v606 = vpop.xlane.xlu0 %605
      %vm607 = vcmask 7168
      %608 = vst.msk [vmem:[%s202] sm:$0xff] %vm607, %v606
      %v609 = vmul.f32 %v598, %v598
      %v610 = vmul.f32 %v600, %v600
      %v611 = vadd.f32 %v609, %v610
      %612 = vadd.xlane.f32.xlu0 %v611
      %v613 = vpop.xlane.xlu0 %612
      %614 = vst.msk [vmem:[%s206] sm:$0xff] %vm607, %v613
      %p615 = scmp.lt.s32.totalorder %s16, 1
      %s616 = scalar_select %p615, %s16, 1
      %s617 = smul.addr %s616, 8
      %s618 = scalar_lea.vmem %s3, %s617
      %p619 = scmp.lt.s32.totalorder %s16, 1
      %s620 = scalar_select %p619, %s16, 1
      %s621 = smul.addr %s620, 8
      %s622 = scalar_lea.vmem %s4, %s621
      // Predicated region
      $region33: #{block_forward.2} parent=31 // pred_check
        %p623 = pneg %p102
      $region34: #{block_forward.2} parent=31 // pred_check_branch
        %625 = sbr.rel (%p623) target = $region36
      $region35: #{block_forward.2} parent=31 // pred_region
        _
      $region36: #{block_forward.2} parent=31 // pred_fallthru
        _
      // Predicated region
      $region37: #{block_forward.2} parent=31 // pred_check
        %p626 = pneg %p128
      $region38: #{block_forward.2} parent=31 // pred_check_branch
        %628 = sbr.rel (%p626) target = $region40
      $region39: #{block_forward.2} parent=31 // pred_region
        _
      $region40: #{block_forward.2} parent=31 // pred_fallthru
        _
    $region32: #{block_forward.2} parent=5 // pred_fallthru
      _
    %p629 = scmp.le.s32.totalorder 2, %s11
    // Predicated region
    $region41: #{block_forward.2} parent=5 // pred_check
      %p630 = pneg %p629
    $region42: #{block_forward.2} parent=5 // pred_check_branch
      %632 = sbr.rel (%p630) target = $region44
    $region43: #{block_forward.2} parent=5 // pred_region
      %s633 = ssub.s32 %s11, 2
      // Predicated region
      $region45: #{block_forward.2} parent=43 // pred_check
        %p634 = pneg %p108
      $region46: #{block_forward.2} parent=43 // pred_check_branch
        %636 = sbr.rel (%p634) target = $region48
      $region47: #{block_forward.2} parent=43 // pred_region
        %p637 = scmp.lt.s32.totalorder %s17, 1
        %s638 = scalar_select %p637, %s17, 1
        %s639 = smul.addr %s638, 8
        %s640 = scalar_lea.vmem %s3, %s639
      $region48: #{block_forward.2} parent=43 // pred_fallthru
        _
      // Predicated region
      $region49: #{block_forward.2} parent=43 // pred_check
        %p641 = pneg %p134
      $region50: #{block_forward.2} parent=43 // pred_check_branch
        %643 = sbr.rel (%p641) target = $region52
      $region51: #{block_forward.2} parent=43 // pred_region
        %p644 = scmp.lt.s32.totalorder %s17, 1
        %s645 = scalar_select %p644, %s17, 1
        %s646 = smul.addr %s645, 8
        %s647 = scalar_lea.vmem %s4, %s646
      $region52: #{block_forward.2} parent=43 // pred_fallthru
        _
    $region44: #{block_forward.2} parent=5 // pred_fallthru
      _
  $region6: #{block_forward.2} parent=0 // loop_footer
    %s15 = sadd.s32 1, %s11
  $region7: #{block_forward.2} parent=0 // loop_footer_branch
    %10 = sbr.rel target = $region3
  $region8: #{block_forward.2} parent=0 // loop_exit
    _

</llo_original>
